<compile_context>
chip_gen: v5e
topology: v5e:2x2
jax: 0.10.0
libtpu: 0.0.40
codegen_flags: <defaults>
</compile_context>

<pallas_src>
import functools

import jax
import jax.numpy as jnp
from jax.experimental import pallas as pl
from jax.experimental.pallas import tpu as pltpu


_MAX_GATHER_ROWS = 256  # caps the statically-unrolled per-row DMA issue loop


def _glove_gather_kernel(i_ref, j_ref, v_hbm, w_hbm, side_ref, out_ref,
                         vbuf, wbuf, sem, sb, sb2, sw, swa, swa2,
                         *, tb, tiles_per_split, packed):
    """One B-tile per grid step; embedding rows gathered by manual double-buffered DMA."""
    p = pl.program_id(0)          # core-split index ("parallel" axis)
    t = pl.program_id(1)          # tile index within the split ("arbitrary" axis)
    T = tiles_per_split

    def issue_gather(tile_idx, slot):
        base = (p * T + tile_idx) * tb
        for r in range(tb):       # static unroll; tb is capped at _MAX_GATHER_ROWS
            row_v = i_ref[base + r]
            row_w = j_ref[base + r]
            pltpu.make_async_copy(v_hbm.at[row_v], vbuf.at[slot, r], sem.at[0, slot]).start()
            pltpu.make_async_copy(w_hbm.at[row_w], wbuf.at[slot, r], sem.at[1, slot]).start()

    @pl.when(t == 0)
    def _init():
        zero = jnp.zeros((tb, 1), jnp.float32)
        sb[...] = zero
        sb2[...] = zero
        sw[...] = zero
        swa[...] = zero
        swa2[...] = zero
        issue_gather(0, 0)        # prime slot 0 with this split's first tile

    slot = t % 2

    @pl.when(t + 1 < T)
    def _prefetch_next():         # enqueue next tile's row DMAs before we block/compute
        issue_gather(t + 1, 1 - slot)

    # DMA semaphores count bytes, so one covering descriptor per table waits for all
    # tb row copies of the current slot (paged-attention "only dst shape matters" trick).
    pltpu.make_async_copy(vbuf.at[slot], vbuf.at[slot], sem.at[0, slot]).wait()
    pltpu.make_async_copy(wbuf.at[slot], wbuf.at[slot], sem.at[1, slot]).wait()

    if packed:
        # Rows were packed 2xbf16 -> u32 in the wrapper; unpack with shift/mask +
        # same-width bitcast (pure VPU, no cross-lane relayout; f32 math everywhere).
        vu = vbuf[slot]
        wu = wbuf[slot]
        hi_mask = jnp.uint32(0xFFFF0000)
        v_even = pltpu.bitcast(vu << 16, jnp.float32)
        v_odd = pltpu.bitcast(vu & hi_mask, jnp.float32)
        w_even = pltpu.bitcast(wu << 16, jnp.float32)
        w_odd = pltpu.bitcast(wu & hi_mask, jnp.float32)
        prod = v_even * w_even + v_odd * w_odd
    else:
        prod = vbuf[slot] * wbuf[slot]
    sim = jnp.sum(prod, axis=1, keepdims=True)            # [tb, 1] (one lane reduce)

    side = side_ref[...]                                   # [tb, 4]: bi, bj, co, weight
    bias = side[:, 0:1] + side[:, 1:2]
    a = sim - jnp.log(side[:, 2:3])
    wgt = side[:, 3:4]

    # Per-row partial sums: VPU adds only; sublane reductions deferred to finalize.
    sb[...] += bias
    sb2[...] += bias * bias
    sw[...] += wgt
    swa[...] += wgt * a
    swa2[...] += wgt * a * a

    @pl.when(t == T - 1)
    def _finalize():
        out_ref[...] = jnp.concatenate([
            jnp.sum(sb[...], axis=0, keepdims=True),
            jnp.sum(sb2[...], axis=0, keepdims=True),
            jnp.sum(sw[...], axis=0, keepdims=True),
            jnp.sum(swa[...], axis=0, keepdims=True),
            jnp.sum(swa2[...], axis=0, keepdims=True),
        ], axis=1)[None]                                   # (1, 1, 5) partial sums for split p


def _pick_tile_b(rows, row_words):
    """Largest tile that divides `rows`, is a multiple of the 32-bit sublane quantum (8),
    keeps the unrolled per-row DMA loop bounded, and keeps each gather slot <= ~2 MiB."""
    if rows % 8 != 0:
        return rows               # single full block fallback
    cap = max(8, min(_MAX_GATHER_ROWS, (2 * 1024 * 1024) // max(1, 4 * row_words)))
    tb = 8
    while tb * 2 <= min(rows, cap) and rows % (tb * 2) == 0:
        tb *= 2
    return tb


def glove_forward(v_emb, w_emb, biasv, biasw, i, j, co_occur, weight,
                  *, embed_dtype=jnp.bfloat16, tile_b=None, num_splits=2):
    """Functional equivalent of GloveModelForBGD.forward.

    embed_dtype=bf16 (default, all generations incl. v5e) halves the embedding bytes
    read from HBM; the rows travel packed as uint32 and are unpacked to f32 in-kernel.
    num_splits=2 maps the batch onto v7x's two TensorCores (runs sequentially on 1-TC chips).
    """
    B = int(i.shape[0])
    V, E = v_emb.shape
    i = i.astype(jnp.int32)
    j = j.astype(jnp.int32)

    use_packed = (jnp.dtype(embed_dtype) == jnp.dtype(jnp.bfloat16)) and (E % 2 == 0)
    if use_packed:
        def pack(tbl):
            u16 = jax.lax.bitcast_convert_type(tbl.astype(jnp.bfloat16), jnp.uint16)
            lo = u16[:, 0::2].astype(jnp.uint32)
            hi = u16[:, 1::2].astype(jnp.uint32)
            return lo | (hi << 16)                         # [V, E//2] uint32
        v_tbl, w_tbl = pack(v_emb), pack(w_emb)
        row_words = E // 2
        buf_dtype = jnp.uint32
    else:                                                  # f32 path (or odd E fallback)
        v_tbl = v_emb.astype(jnp.float32)
        w_tbl = w_emb.astype(jnp.float32)
        row_words = E
        buf_dtype = jnp.float32

    # TODO(synk): the 1-wide bias-embedding gathers stay as wrapper-side XLA gathers;
    # per-row 4-byte DMAs would cost more than this tiny (B*4-byte) gather.
    side = jnp.stack([
        biasv[i].reshape(B).astype(jnp.float32),
        biasw[j].reshape(B).astype(jnp.float32),
        co_occur.reshape(B).astype(jnp.float32),
        weight.reshape(B).astype(jnp.float32),
    ], axis=1)                                             # [B, 4]

    splits = max(1, int(num_splits))
    if B % (splits * 8) != 0:
        splits = 1
    rows = B // splits
    if tile_b is None:
        tb = _pick_tile_b(rows, row_words)
    else:
        tb = int(tile_b)
        if rows % tb != 0 or (tb % 8 != 0 and tb != rows):
            raise ValueError(f"tile_b={tb} incompatible with rows-per-split={rows}")
    T = rows // tb

    kernel = functools.partial(_glove_gather_kernel, tb=tb, tiles_per_split=T,
                               packed=use_packed)
    out = pl.pallas_call(
        kernel,
        out_shape=jax.ShapeDtypeStruct((splits, 1, 5), jnp.float32),
        grid_spec=pltpu.PrefetchScalarGridSpec(
            num_scalar_prefetch=2,                         # i, j -> SMEM
            grid=(splits, T),
            in_specs=[
                pl.BlockSpec(memory_space=pl.ANY),         # v table, stays in HBM
                pl.BlockSpec(memory_space=pl.ANY),         # w table, stays in HBM
                pl.BlockSpec((tb, 4),                      # packed side columns, one DMA/step
                             lambda p, t, i_pref, j_pref, T=T: (p * T + t, 0)),
            ],
            out_specs=pl.BlockSpec((1, 1, 5),
                                   lambda p, t, i_pref, j_pref: (p, 0, 0)),
            scratch_shapes=[
                pltpu.VMEM((2, tb, row_words), buf_dtype),  # double-buffered v rows
                pltpu.VMEM((2, tb, row_words), buf_dtype),  # double-buffered w rows
                pltpu.SemaphoreType.DMA((2, 2)),            # [table, slot]
                pltpu.VMEM((tb, 1), jnp.float32),           # S_b   partials
                pltpu.VMEM((tb, 1), jnp.float32),           # S_b2  partials
                pltpu.VMEM((tb, 1), jnp.float32),           # S_w   partials
                pltpu.VMEM((tb, 1), jnp.float32),           # S_wa  partials
                pltpu.VMEM((tb, 1), jnp.float32),           # S_wa2 partials
            ],
        ),
        compiler_params=pltpu.CompilerParams(
            dimension_semantics=("parallel", "arbitrary")),
    )(i, j, v_tbl, w_tbl, side)

    sums = jnp.sum(out, axis=(0, 1))                       # combine per-split partial sums
    s_b, s_b2, s_w, s_wa, s_wa2 = sums[0], sums[1], sums[2], sums[3], sums[4]
    return 0.5 * (s_b2 * s_w + 2.0 * s_b * s_wa + jnp.float32(B) * s_wa2)


def glove_forward_ref(v_emb, w_emb, biasv, biasw, i, j, co_occur, weight):
    """Pure-JAX reference mirroring PyTorch broadcasting exactly."""
    vi = v_emb[i]
    wj = w_emb[j]
    bi = biasv[i]                                           # [B, 1]
    bj = biasw[j]                                           # [B, 1]
    similarity = jnp.sum(vi * wj, axis=1)                   # [B]
    loss = similarity + bi + bj - jnp.log(co_occur)         # [B, B] (torch broadcast quirk)
    loss = 0.5 * weight * loss * loss                       # weight[c] broadcasts over rows
    return loss.sum()                                       # .mean() of a scalar == itself


if __name__ == "__main__":
    key = jax.random.PRNGKey(0)
    vocab_size, embed_size, B = 64, 128, 32
    k1, k2, k3, k4, k5, k6, k7, k8 = jax.random.split(key, 8)

    initrange = 0.5 / embed_size
    v_emb = jax.random.uniform(k1, (vocab_size, embed_size), jnp.float32, -initrange, initrange)
    w_emb = jax.random.uniform(k2, (vocab_size, embed_size), jnp.float32, -initrange, initrange)
    biasv = jax.random.normal(k3, (vocab_size, 1), jnp.float32)
    biasw = jax.random.normal(k4, (vocab_size, 1), jnp.float32)

    i = jax.random.randint(k5, (B,), 0, vocab_size)
    j = jax.random.randint(k6, (B,), 0, vocab_size)
    co_occur = jax.random.uniform(k7, (B,), jnp.float32, 1.0, 100.0)   # > 0 for log
    weight = jax.random.uniform(k8, (B,), jnp.float32, 0.1, 1.0)

    ref = float(glove_forward_ref(v_emb, w_emb, biasv, biasw, i, j, co_occur, weight))

    def check(val, tol):
        assert abs(float(val) - ref) <= tol * max(1.0, abs(ref)), (float(val), ref)

    # 1) f32 transfer, explicit small tile -> grid (2 splits x 2 tiles): exercises the
    #    init / prefetch / finalize pipeline and the parallel split.
    out_a = jax.block_until_ready(
        glove_forward(v_emb, w_emb, biasv, biasw, i, j, co_occur, weight,
                      embed_dtype=jnp.float32, tile_b=8, num_splits=2))
    check(out_a, 1e-3)

    # 2) bf16-packed transfer, small tile, single split -> grid (1 x 4): longer pipeline.
    out_b = jax.block_until_ready(
        glove_forward(v_emb, w_emb, biasv, biasw, i, j, co_occur, weight,
                      embed_dtype=jnp.bfloat16, tile_b=8, num_splits=1))
    check(out_b, 2e-3)

    # 3) defaults: bf16-packed, auto tile, 2-way core split.
    out_c = jax.block_until_ready(
        glove_forward(v_emb, w_emb, biasv, biasw, i, j, co_occur, weight))
    check(out_c, 2e-3)

    print("KERNEL_OK")
</pallas_src>

<mosaic_0001>
module attributes {stable_mosaic.version = 11 : i64} {
  func.func @_glove_gather_kernel(%arg0: i32, %arg1: i32, %arg2: memref<32xi32, #tpu.memory_space<smem>>, %arg3: memref<32xi32, #tpu.memory_space<smem>>, %arg4: memref<64x128xf32, #tpu.memory_space<any>>, %arg5: memref<64x128xf32, #tpu.memory_space<any>>, %arg6: memref<8x4xf32, #tpu.memory_space<vmem>>, %arg7: memref<1x1x5xf32, #tpu.memory_space<vmem>>, %arg8: memref<2x8x128xf32, #tpu.memory_space<vmem>>, %arg9: memref<2x8x128xf32, #tpu.memory_space<vmem>>, %arg10: memref<2x2x!tpu.dma_semaphore, #tpu.memory_space<semaphore_mem>>, %arg11: memref<8x1xf32, #tpu.memory_space<vmem>>, %arg12: memref<8x1xf32, #tpu.memory_space<vmem>>, %arg13: memref<8x1xf32, #tpu.memory_space<vmem>>, %arg14: memref<8x1xf32, #tpu.memory_space<vmem>>, %arg15: memref<8x1xf32, #tpu.memory_space<vmem>>) attributes {dimension_semantics = [#tpu.dimension_semantics<parallel>, #tpu.dimension_semantics<arbitrary>], iteration_bounds = array<i64: 2, 2>, scalar_prefetch = 2 : i64, scratch_operands = 8 : i64, tpu.core_type = #tpu.core_type<tc>, window_params = [{}, {}, {transform_indices = @transform_2, window_bounds = array<i64: 8, 4>}, {transform_indices = @transform_3, window_bounds = array<i64: 1, 1, 5>}]} {
    %c0_i32 = arith.constant 0 : i32
    %0 = arith.cmpi eq, %arg1, %c0_i32 : i32
    %1 = arith.extui %0 : i1 to i32
    %c0_i32_0 = arith.constant 0 : i32
    %2 = arith.cmpi ne, %1, %c0_i32_0 : i32
    scf.if %2 {
      %cst_45 = arith.constant 0.000000e+00 : f32
      %68 = vector.broadcast %cst_45 : f32 to vector<8x1xf32>
      %c0_46 = arith.constant 0 : index
      %c0_47 = arith.constant 0 : index
      %69 = vector.load %arg11[%c0_46, %c0_47] : memref<8x1xf32, #tpu.memory_space<vmem>>, vector<8x1xf32>
      tpu.vector_store %arg11[%c0_46, %c0_47], %68 {strides = array<i32>} : memref<8x1xf32, #tpu.memory_space<vmem>>, vector<8x1xf32>,
      %c0_48 = arith.constant 0 : index
      %c0_49 = arith.constant 0 : index
      %70 = vector.load %arg12[%c0_48, %c0_49] : memref<8x1xf32, #tpu.memory_space<vmem>>, vector<8x1xf32>
      tpu.vector_store %arg12[%c0_48, %c0_49], %68 {strides = array<i32>} : memref<8x1xf32, #tpu.memory_space<vmem>>, vector<8x1xf32>,
      %c0_50 = arith.constant 0 : index
      %c0_51 = arith.constant 0 : index
      %71 = vector.load %arg13[%c0_50, %c0_51] : memref<8x1xf32, #tpu.memory_space<vmem>>, vector<8x1xf32>
      tpu.vector_store %arg13[%c0_50, %c0_51], %68 {strides = array<i32>} : memref<8x1xf32, #tpu.memory_space<vmem>>, vector<8x1xf32>,
      %c0_52 = arith.constant 0 : index
      %c0_53 = arith.constant 0 : index
      %72 = vector.load %arg14[%c0_52, %c0_53] : memref<8x1xf32, #tpu.memory_space<vmem>>, vector<8x1xf32>
      tpu.vector_store %arg14[%c0_52, %c0_53], %68 {strides = array<i32>} : memref<8x1xf32, #tpu.memory_space<vmem>>, vector<8x1xf32>,
      %c0_54 = arith.constant 0 : index
      %c0_55 = arith.constant 0 : index
      %73 = vector.load %arg15[%c0_54, %c0_55] : memref<8x1xf32, #tpu.memory_space<vmem>>, vector<8x1xf32>
      tpu.vector_store %arg15[%c0_54, %c0_55], %68 {strides = array<i32>} : memref<8x1xf32, #tpu.memory_space<vmem>>, vector<8x1xf32>,
      %c2_i32_56 = arith.constant 2 : i32
      %74 = arith.muli %arg0, %c2_i32_56 : i32
      %c0_i32_57 = arith.constant 0 : i32
      %75 = arith.addi %74, %c0_i32_57 : i32
      %c8_i32 = arith.constant 8 : i32
      %76 = arith.muli %75, %c8_i32 : i32
      %c0_i32_58 = arith.constant 0 : i32
      %77 = arith.addi %76, %c0_i32_58 : i32
      %78 = arith.index_cast %77 : i32 to index
      %79 = memref.load %arg2[%78] : memref<32xi32, #tpu.memory_space<smem>>
      %c0_i32_59 = arith.constant 0 : i32
      %80 = arith.addi %76, %c0_i32_59 : i32
      %81 = arith.index_cast %80 : i32 to index
      %82 = memref.load %arg3[%81] : memref<32xi32, #tpu.memory_space<smem>>
      %c0_i32_60 = arith.constant 0 : i32
      %c0_i32_61 = arith.constant 0 : i32
      %c0_i32_62 = arith.constant 0 : i32
      %c0_i32_63 = arith.constant 0 : i32
      %c0_i32_64 = arith.constant 0 : i32
      %83 = tpu.memref_slice %arg4[%79, %c0_i32_64] : memref<64x128xf32, #tpu.memory_space<any>> -> memref<1x128xf32, #tpu.memory_space<any>>
      %84 = tpu.memref_squeeze %83 : memref<1x128xf32, #tpu.memory_space<any>> -> memref<128xf32, #tpu.memory_space<any>>
      %c0_i32_65 = arith.constant 0 : i32
      %85 = tpu.memref_slice %arg8[%c0_i32_60, %c0_i32_61, %c0_i32_65] : memref<2x8x128xf32, #tpu.memory_space<vmem>> -> memref<1x1x128xf32, #tpu.memory_space<vmem>>
      %86 = tpu.memref_squeeze %85 : memref<1x1x128xf32, #tpu.memory_space<vmem>> -> memref<128xf32, #tpu.memory_space<vmem>>
      %87 = tpu.memref_slice %arg10[%c0_i32_62, %c0_i32_63] : memref<2x2x!tpu.dma_semaphore, #tpu.memory_space<semaphore_mem>> -> memref<1x1x!tpu.dma_semaphore, #tpu.memory_space<semaphore_mem>>
      %88 = tpu.memref_squeeze %87 : memref<1x1x!tpu.dma_semaphore, #tpu.memory_space<semaphore_mem>> -> memref<!tpu.dma_semaphore, #tpu.memory_space<semaphore_mem>>
      tpu.enqueue_dma source(%84 : memref<128xf32, #tpu.memory_space<any>>) target(%86 : memref<128xf32, #tpu.memory_space<vmem>>) target_semaphore(%88 : memref<!tpu.dma_semaphore, #tpu.memory_space<semaphore_mem>>)
      %c0_i32_66 = arith.constant 0 : i32
      %c0_i32_67 = arith.constant 0 : i32
      %c1_i32_68 = arith.constant 1 : i32
      %c0_i32_69 = arith.constant 0 : i32
      %c0_i32_70 = arith.constant 0 : i32
      %89 = tpu.memref_slice %arg5[%82, %c0_i32_70] : memref<64x128xf32, #tpu.memory_space<any>> -> memref<1x128xf32, #tpu.memory_space<any>>
      %90 = tpu.memref_squeeze %89 : memref<1x128xf32, #tpu.memory_space<any>> -> memref<128xf32, #tpu.memory_space<any>>
      %c0_i32_71 = arith.constant 0 : i32
      %91 = tpu.memref_slice %arg9[%c0_i32_66, %c0_i32_67, %c0_i32_71] : memref<2x8x128xf32, #tpu.memory_space<vmem>> -> memref<1x1x128xf32, #tpu.memory_space<vmem>>
      %92 = tpu.memref_squeeze %91 : memref<1x1x128xf32, #tpu.memory_space<vmem>> -> memref<128xf32, #tpu.memory_space<vmem>>
      %93 = tpu.memref_slice %arg10[%c1_i32_68, %c0_i32_69] : memref<2x2x!tpu.dma_semaphore, #tpu.memory_space<semaphore_mem>> -> memref<1x1x!tpu.dma_semaphore, #tpu.memory_space<semaphore_mem>>
      %94 = tpu.memref_squeeze %93 : memref<1x1x!tpu.dma_semaphore, #tpu.memory_space<semaphore_mem>> -> memref<!tpu.dma_semaphore, #tpu.memory_space<semaphore_mem>>
      tpu.enqueue_dma source(%90 : memref<128xf32, #tpu.memory_space<any>>) target(%92 : memref<128xf32, #tpu.memory_space<vmem>>) target_semaphore(%94 : memref<!tpu.dma_semaphore, #tpu.memory_space<semaphore_mem>>)
      %c1_i32_72 = arith.constant 1 : i32
      %95 = arith.addi %76, %c1_i32_72 : i32
      %96 = arith.index_cast %95 : i32 to index
      %97 = memref.load %arg2[%96] : memref<32xi32, #tpu.memory_space<smem>>
      %c1_i32_73 = arith.constant 1 : i32
      %98 = arith.addi %76, %c1_i32_73 : i32
      %99 = arith.index_cast %98 : i32 to index
      %100 = memref.load %arg3[%99] : memref<32xi32, #tpu.memory_space<smem>>
      %c0_i32_74 = arith.constant 0 : i32
      %c1_i32_75 = arith.constant 1 : i32
      %c0_i32_76 = arith.constant 0 : i32
      %c0_i32_77 = arith.constant 0 : i32
      %c0_i32_78 = arith.constant 0 : i32
      %101 = tpu.memref_slice %arg4[%97, %c0_i32_78] : memref<64x128xf32, #tpu.memory_space<any>> -> memref<1x128xf32, #tpu.memory_space<any>>
      %102 = tpu.memref_squeeze %101 : memref<1x128xf32, #tpu.memory_space<any>> -> memref<128xf32, #tpu.memory_space<any>>
      %c0_i32_79 = arith.constant 0 : i32
      %103 = tpu.memref_slice %arg8[%c0_i32_74, %c1_i32_75, %c0_i32_79] : memref<2x8x128xf32, #tpu.memory_space<vmem>> -> memref<1x1x128xf32, #tpu.memory_space<vmem>>
      %104 = tpu.memref_squeeze %103 : memref<1x1x128xf32, #tpu.memory_space<vmem>> -> memref<128xf32, #tpu.memory_space<vmem>>
      %105 = tpu.memref_slice %arg10[%c0_i32_76, %c0_i32_77] : memref<2x2x!tpu.dma_semaphore, #tpu.memory_space<semaphore_mem>> -> memref<1x1x!tpu.dma_semaphore, #tpu.memory_space<semaphore_mem>>
      %106 = tpu.memref_squeeze %105 : memref<1x1x!tpu.dma_semaphore, #tpu.memory_space<semaphore_mem>> -> memref<!tpu.dma_semaphore, #tpu.memory_space<semaphore_mem>>
      tpu.enqueue_dma source(%102 : memref<128xf32, #tpu.memory_space<any>>) target(%104 : memref<128xf32, #tpu.memory_space<vmem>>) target_semaphore(%106 : memref<!tpu.dma_semaphore, #tpu.memory_space<semaphore_mem>>)
      %c0_i32_80 = arith.constant 0 : i32
      %c1_i32_81 = arith.constant 1 : i32
      %c1_i32_82 = arith.constant 1 : i32
      %c0_i32_83 = arith.constant 0 : i32
      %c0_i32_84 = arith.constant 0 : i32
      %107 = tpu.memref_slice %arg5[%100, %c0_i32_84] : memref<64x128xf32, #tpu.memory_space<any>> -> memref<1x128xf32, #tpu.memory_space<any>>
      %108 = tpu.memref_squeeze %107 : memref<1x128xf32, #tpu.memory_space<any>> -> memref<128xf32, #tpu.memory_space<any>>
      %c0_i32_85 = arith.constant 0 : i32
      %109 = tpu.memref_slice %arg9[%c0_i32_80, %c1_i32_81, %c0_i32_85] : memref<2x8x128xf32, #tpu.memory_space<vmem>> -> memref<1x1x128xf32, #tpu.memory_space<vmem>>
      %110 = tpu.memref_squeeze %109 : memref<1x1x128xf32, #tpu.memory_space<vmem>> -> memref<128xf32, #tpu.memory_space<vmem>>
      %111 = tpu.memref_slice %arg10[%c1_i32_82, %c0_i32_83] : memref<2x2x!tpu.dma_semaphore, #tpu.memory_space<semaphore_mem>> -> memref<1x1x!tpu.dma_semaphore, #tpu.memory_space<semaphore_mem>>
      %112 = tpu.memref_squeeze %111 : memref<1x1x!tpu.dma_semaphore, #tpu.memory_space<semaphore_mem>> -> memref<!tpu.dma_semaphore, #tpu.memory_space<semaphore_mem>>
      tpu.enqueue_dma source(%108 : memref<128xf32, #tpu.memory_space<any>>) target(%110 : memref<128xf32, #tpu.memory_space<vmem>>) target_semaphore(%112 : memref<!tpu.dma_semaphore, #tpu.memory_space<semaphore_mem>>)
      %c2_i32_86 = arith.constant 2 : i32
      %113 = arith.addi %76, %c2_i32_86 : i32
      %114 = arith.index_cast %113 : i32 to index
      %115 = memref.load %arg2[%114] : memref<32xi32, #tpu.memory_space<smem>>
      %c2_i32_87 = arith.constant 2 : i32
      %116 = arith.addi %76, %c2_i32_87 : i32
      %117 = arith.index_cast %116 : i32 to index
      %118 = memref.load %arg3[%117] : memref<32xi32, #tpu.memory_space<smem>>
      %c0_i32_88 = arith.constant 0 : i32
      %c2_i32_89 = arith.constant 2 : i32
      %c0_i32_90 = arith.constant 0 : i32
      %c0_i32_91 = arith.constant 0 : i32
      %c0_i32_92 = arith.constant 0 : i32
      %119 = tpu.memref_slice %arg4[%115, %c0_i32_92] : memref<64x128xf32, #tpu.memory_space<any>> -> memref<1x128xf32, #tpu.memory_space<any>>
      %120 = tpu.memref_squeeze %119 : memref<1x128xf32, #tpu.memory_space<any>> -> memref<128xf32, #tpu.memory_space<any>>
      %c0_i32_93 = arith.constant 0 : i32
      %121 = tpu.memref_slice %arg8[%c0_i32_88, %c2_i32_89, %c0_i32_93] : memref<2x8x128xf32, #tpu.memory_space<vmem>> -> memref<1x1x128xf32, #tpu.memory_space<vmem>>
      %122 = tpu.memref_squeeze %121 : memref<1x1x128xf32, #tpu.memory_space<vmem>> -> memref<128xf32, #tpu.memory_space<vmem>>
      %123 = tpu.memref_slice %arg10[%c0_i32_90, %c0_i32_91] : memref<2x2x!tpu.dma_semaphore, #tpu.memory_space<semaphore_mem>> -> memref<1x1x!tpu.dma_semaphore, #tpu.memory_space<semaphore_mem>>
      %124 = tpu.memref_squeeze %123 : memref<1x1x!tpu.dma_semaphore, #tpu.memory_space<semaphore_mem>> -> memref<!tpu.dma_semaphore, #tpu.memory_space<semaphore_mem>>
      tpu.enqueue_dma source(%120 : memref<128xf32, #tpu.memory_space<any>>) target(%122 : memref<128xf32, #tpu.memory_space<vmem>>) target_semaphore(%124 : memref<!tpu.dma_semaphore, #tpu.memory_space<semaphore_mem>>)
      %c0_i32_94 = arith.constant 0 : i32
      %c2_i32_95 = arith.constant 2 : i32
      %c1_i32_96 = arith.constant 1 : i32
      %c0_i32_97 = arith.constant 0 : i32
      %c0_i32_98 = arith.constant 0 : i32
      %125 = tpu.memref_slice %arg5[%118, %c0_i32_98] : memref<64x128xf32, #tpu.memory_space<any>> -> memref<1x128xf32, #tpu.memory_space<any>>
      %126 = tpu.memref_squeeze %125 : memref<1x128xf32, #tpu.memory_space<any>> -> memref<128xf32, #tpu.memory_space<any>>
      %c0_i32_99 = arith.constant 0 : i32
      %127 = tpu.memref_slice %arg9[%c0_i32_94, %c2_i32_95, %c0_i32_99] : memref<2x8x128xf32, #tpu.memory_space<vmem>> -> memref<1x1x128xf32, #tpu.memory_space<vmem>>
      %128 = tpu.memref_squeeze %127 : memref<1x1x128xf32, #tpu.memory_space<vmem>> -> memref<128xf32, #tpu.memory_space<vmem>>
      %129 = tpu.memref_slice %arg10[%c1_i32_96, %c0_i32_97] : memref<2x2x!tpu.dma_semaphore, #tpu.memory_space<semaphore_mem>> -> memref<1x1x!tpu.dma_semaphore, #tpu.memory_space<semaphore_mem>>
      %130 = tpu.memref_squeeze %129 : memref<1x1x!tpu.dma_semaphore, #tpu.memory_space<semaphore_mem>> -> memref<!tpu.dma_semaphore, #tpu.memory_space<semaphore_mem>>
      tpu.enqueue_dma source(%126 : memref<128xf32, #tpu.memory_space<any>>) target(%128 : memref<128xf32, #tpu.memory_space<vmem>>) target_semaphore(%130 : memref<!tpu.dma_semaphore, #tpu.memory_space<semaphore_mem>>)
      %c3_i32 = arith.constant 3 : i32
      %131 = arith.addi %76, %c3_i32 : i32
      %132 = arith.index_cast %131 : i32 to index
      %133 = memref.load %arg2[%132] : memref<32xi32, #tpu.memory_space<smem>>
      %c3_i32_100 = arith.constant 3 : i32
      %134 = arith.addi %76, %c3_i32_100 : i32
      %135 = arith.index_cast %134 : i32 to index
      %136 = memref.load %arg3[%135] : memref<32xi32, #tpu.memory_space<smem>>
      %c0_i32_101 = arith.constant 0 : i32
      %c3_i32_102 = arith.constant 3 : i32
      %c0_i32_103 = arith.constant 0 : i32
      %c0_i32_104 = arith.constant 0 : i32
      %c0_i32_105 = arith.constant 0 : i32
      %137 = tpu.memref_slice %arg4[%133, %c0_i32_105] : memref<64x128xf32, #tpu.memory_space<any>> -> memref<1x128xf32, #tpu.memory_space<any>>
      %138 = tpu.memref_squeeze %137 : memref<1x128xf32, #tpu.memory_space<any>> -> memref<128xf32, #tpu.memory_space<any>>
      %c0_i32_106 = arith.constant 0 : i32
      %139 = tpu.memref_slice %arg8[%c0_i32_101, %c3_i32_102, %c0_i32_106] : memref<2x8x128xf32, #tpu.memory_space<vmem>> -> memref<1x1x128xf32, #tpu.memory_space<vmem>>
      %140 = tpu.memref_squeeze %139 : memref<1x1x128xf32, #tpu.memory_space<vmem>> -> memref<128xf32, #tpu.memory_space<vmem>>
      %141 = tpu.memref_slice %arg10[%c0_i32_103, %c0_i32_104] : memref<2x2x!tpu.dma_semaphore, #tpu.memory_space<semaphore_mem>> -> memref<1x1x!tpu.dma_semaphore, #tpu.memory_space<semaphore_mem>>
      %142 = tpu.memref_squeeze %141 : memref<1x1x!tpu.dma_semaphore, #tpu.memory_space<semaphore_mem>> -> memref<!tpu.dma_semaphore, #tpu.memory_space<semaphore_mem>>
      tpu.enqueue_dma source(%138 : memref<128xf32, #tpu.memory_space<any>>) target(%140 : memref<128xf32, #tpu.memory_space<vmem>>) target_semaphore(%142 : memref<!tpu.dma_semaphore, #tpu.memory_space<semaphore_mem>>)
      %c0_i32_107 = arith.constant 0 : i32
      %c3_i32_108 = arith.constant 3 : i32
      %c1_i32_109 = arith.constant 1 : i32
      %c0_i32_110 = arith.constant 0 : i32
      %c0_i32_111 = arith.constant 0 : i32
      %143 = tpu.memref_slice %arg5[%136, %c0_i32_111] : memref<64x128xf32, #tpu.memory_space<any>> -> memref<1x128xf32, #tpu.memory_space<any>>
      %144 = tpu.memref_squeeze %143 : memref<1x128xf32, #tpu.memory_space<any>> -> memref<128xf32, #tpu.memory_space<any>>
      %c0_i32_112 = arith.constant 0 : i32
      %145 = tpu.memref_slice %arg9[%c0_i32_107, %c3_i32_108, %c0_i32_112] : memref<2x8x128xf32, #tpu.memory_space<vmem>> -> memref<1x1x128xf32, #tpu.memory_space<vmem>>
      %146 = tpu.memref_squeeze %145 : memref<1x1x128xf32, #tpu.memory_space<vmem>> -> memref<128xf32, #tpu.memory_space<vmem>>
      %147 = tpu.memref_slice %arg10[%c1_i32_109, %c0_i32_110] : memref<2x2x!tpu.dma_semaphore, #tpu.memory_space<semaphore_mem>> -> memref<1x1x!tpu.dma_semaphore, #tpu.memory_space<semaphore_mem>>
      %148 = tpu.memref_squeeze %147 : memref<1x1x!tpu.dma_semaphore, #tpu.memory_space<semaphore_mem>> -> memref<!tpu.dma_semaphore, #tpu.memory_space<semaphore_mem>>
      tpu.enqueue_dma source(%144 : memref<128xf32, #tpu.memory_space<any>>) target(%146 : memref<128xf32, #tpu.memory_space<vmem>>) target_semaphore(%148 : memref<!tpu.dma_semaphore, #tpu.memory_space<semaphore_mem>>)
      %c4_i32 = arith.constant 4 : i32
      %149 = arith.addi %76, %c4_i32 : i32
      %150 = arith.index_cast %149 : i32 to index
      %151 = memref.load %arg2[%150] : memref<32xi32, #tpu.memory_space<smem>>
      %c4_i32_113 = arith.constant 4 : i32
      %152 = arith.addi %76, %c4_i32_113 : i32
      %153 = arith.index_cast %152 : i32 to index
      %154 = memref.load %arg3[%153] : memref<32xi32, #tpu.memory_space<smem>>
      %c0_i32_114 = arith.constant 0 : i32
      %c4_i32_115 = arith.constant 4 : i32
      %c0_i32_116 = arith.constant 0 : i32
      %c0_i32_117 = arith.constant 0 : i32
      %c0_i32_118 = arith.constant 0 : i32
      %155 = tpu.memref_slice %arg4[%151, %c0_i32_118] : memref<64x128xf32, #tpu.memory_space<any>> -> memref<1x128xf32, #tpu.memory_space<any>>
      %156 = tpu.memref_squeeze %155 : memref<1x128xf32, #tpu.memory_space<any>> -> memref<128xf32, #tpu.memory_space<any>>
      %c0_i32_119 = arith.constant 0 : i32
      %157 = tpu.memref_slice %arg8[%c0_i32_114, %c4_i32_115, %c0_i32_119] : memref<2x8x128xf32, #tpu.memory_space<vmem>> -> memref<1x1x128xf32, #tpu.memory_space<vmem>>
      %158 = tpu.memref_squeeze %157 : memref<1x1x128xf32, #tpu.memory_space<vmem>> -> memref<128xf32, #tpu.memory_space<vmem>>
      %159 = tpu.memref_slice %arg10[%c0_i32_116, %c0_i32_117] : memref<2x2x!tpu.dma_semaphore, #tpu.memory_space<semaphore_mem>> -> memref<1x1x!tpu.dma_semaphore, #tpu.memory_space<semaphore_mem>>
      %160 = tpu.memref_squeeze %159 : memref<1x1x!tpu.dma_semaphore, #tpu.memory_space<semaphore_mem>> -> memref<!tpu.dma_semaphore, #tpu.memory_space<semaphore_mem>>
      tpu.enqueue_dma source(%156 : memref<128xf32, #tpu.memory_space<any>>) target(%158 : memref<128xf32, #tpu.memory_space<vmem>>) target_semaphore(%160 : memref<!tpu.dma_semaphore, #tpu.memory_space<semaphore_mem>>)
      %c0_i32_120 = arith.constant 0 : i32
      %c4_i32_121 = arith.constant 4 : i32
      %c1_i32_122 = arith.constant 1 : i32
      %c0_i32_123 = arith.constant 0 : i32
      %c0_i32_124 = arith.constant 0 : i32
      %161 = tpu.memref_slice %arg5[%154, %c0_i32_124] : memref<64x128xf32, #tpu.memory_space<any>> -> memref<1x128xf32, #tpu.memory_space<any>>
      %162 = tpu.memref_squeeze %161 : memref<1x128xf32, #tpu.memory_space<any>> -> memref<128xf32, #tpu.memory_space<any>>
      %c0_i32_125 = arith.constant 0 : i32
      %163 = tpu.memref_slice %arg9[%c0_i32_120, %c4_i32_121, %c0_i32_125] : memref<2x8x128xf32, #tpu.memory_space<vmem>> -> memref<1x1x128xf32, #tpu.memory_space<vmem>>
      %164 = tpu.memref_squeeze %163 : memref<1x1x128xf32, #tpu.memory_space<vmem>> -> memref<128xf32, #tpu.memory_space<vmem>>
      %165 = tpu.memref_slice %arg10[%c1_i32_122, %c0_i32_123] : memref<2x2x!tpu.dma_semaphore, #tpu.memory_space<semaphore_mem>> -> memref<1x1x!tpu.dma_semaphore, #tpu.memory_space<semaphore_mem>>
      %166 = tpu.memref_squeeze %165 : memref<1x1x!tpu.dma_semaphore, #tpu.memory_space<semaphore_mem>> -> memref<!tpu.dma_semaphore, #tpu.memory_space<semaphore_mem>>
      tpu.enqueue_dma source(%162 : memref<128xf32, #tpu.memory_space<any>>) target(%164 : memref<128xf32, #tpu.memory_space<vmem>>) target_semaphore(%166 : memref<!tpu.dma_semaphore, #tpu.memory_space<semaphore_mem>>)
      %c5_i32 = arith.constant 5 : i32
      %167 = arith.addi %76, %c5_i32 : i32
      %168 = arith.index_cast %167 : i32 to index
      %169 = memref.load %arg2[%168] : memref<32xi32, #tpu.memory_space<smem>>
      %c5_i32_126 = arith.constant 5 : i32
      %170 = arith.addi %76, %c5_i32_126 : i32
      %171 = arith.index_cast %170 : i32 to index
      %172 = memref.load %arg3[%171] : memref<32xi32, #tpu.memory_space<smem>>
      %c0_i32_127 = arith.constant 0 : i32
      %c5_i32_128 = arith.constant 5 : i32
      %c0_i32_129 = arith.constant 0 : i32
      %c0_i32_130 = arith.constant 0 : i32
      %c0_i32_131 = arith.constant 0 : i32
      %173 = tpu.memref_slice %arg4[%169, %c0_i32_131] : memref<64x128xf32, #tpu.memory_space<any>> -> memref<1x128xf32, #tpu.memory_space<any>>
      %174 = tpu.memref_squeeze %173 : memref<1x128xf32, #tpu.memory_space<any>> -> memref<128xf32, #tpu.memory_space<any>>
      %c0_i32_132 = arith.constant 0 : i32
      %175 = tpu.memref_slice %arg8[%c0_i32_127, %c5_i32_128, %c0_i32_132] : memref<2x8x128xf32, #tpu.memory_space<vmem>> -> memref<1x1x128xf32, #tpu.memory_space<vmem>>
      %176 = tpu.memref_squeeze %175 : memref<1x1x128xf32, #tpu.memory_space<vmem>> -> memref<128xf32, #tpu.memory_space<vmem>>
      %177 = tpu.memref_slice %arg10[%c0_i32_129, %c0_i32_130] : memref<2x2x!tpu.dma_semaphore, #tpu.memory_space<semaphore_mem>> -> memref<1x1x!tpu.dma_semaphore, #tpu.memory_space<semaphore_mem>>
      %178 = tpu.memref_squeeze %177 : memref<1x1x!tpu.dma_semaphore, #tpu.memory_space<semaphore_mem>> -> memref<!tpu.dma_semaphore, #tpu.memory_space<semaphore_mem>>
      tpu.enqueue_dma source(%174 : memref<128xf32, #tpu.memory_space<any>>) target(%176 : memref<128xf32, #tpu.memory_space<vmem>>) target_semaphore(%178 : memref<!tpu.dma_semaphore, #tpu.memory_space<semaphore_mem>>)
      %c0_i32_133 = arith.constant 0 : i32
      %c5_i32_134 = arith.constant 5 : i32
      %c1_i32_135 = arith.constant 1 : i32
      %c0_i32_136 = arith.constant 0 : i32
      %c0_i32_137 = arith.constant 0 : i32
      %179 = tpu.memref_slice %arg5[%172, %c0_i32_137] : memref<64x128xf32, #tpu.memory_space<any>> -> memref<1x128xf32, #tpu.memory_space<any>>
      %180 = tpu.memref_squeeze %179 : memref<1x128xf32, #tpu.memory_space<any>> -> memref<128xf32, #tpu.memory_space<any>>
      %c0_i32_138 = arith.constant 0 : i32
      %181 = tpu.memref_slice %arg9[%c0_i32_133, %c5_i32_134, %c0_i32_138] : memref<2x8x128xf32, #tpu.memory_space<vmem>> -> memref<1x1x128xf32, #tpu.memory_space<vmem>>
      %182 = tpu.memref_squeeze %181 : memref<1x1x128xf32, #tpu.memory_space<vmem>> -> memref<128xf32, #tpu.memory_space<vmem>>
      %183 = tpu.memref_slice %arg10[%c1_i32_135, %c0_i32_136] : memref<2x2x!tpu.dma_semaphore, #tpu.memory_space<semaphore_mem>> -> memref<1x1x!tpu.dma_semaphore, #tpu.memory_space<semaphore_mem>>
      %184 = tpu.memref_squeeze %183 : memref<1x1x!tpu.dma_semaphore, #tpu.memory_space<semaphore_mem>> -> memref<!tpu.dma_semaphore, #tpu.memory_space<semaphore_mem>>
      tpu.enqueue_dma source(%180 : memref<128xf32, #tpu.memory_space<any>>) target(%182 : memref<128xf32, #tpu.memory_space<vmem>>) target_semaphore(%184 : memref<!tpu.dma_semaphore, #tpu.memory_space<semaphore_mem>>)
      %c6_i32 = arith.constant 6 : i32
      %185 = arith.addi %76, %c6_i32 : i32
      %186 = arith.index_cast %185 : i32 to index
      %187 = memref.load %arg2[%186] : memref<32xi32, #tpu.memory_space<smem>>
      %c6_i32_139 = arith.constant 6 : i32
      %188 = arith.addi %76, %c6_i32_139 : i32
      %189 = arith.index_cast %188 : i32 to index
      %190 = memref.load %arg3[%189] : memref<32xi32, #tpu.memory_space<smem>>
      %c0_i32_140 = arith.constant 0 : i32
      %c6_i32_141 = arith.constant 6 : i32
      %c0_i32_142 = arith.constant 0 : i32
      %c0_i32_143 = arith.constant 0 : i32
      %c0_i32_144 = arith.constant 0 : i32
      %191 = tpu.memref_slice %arg4[%187, %c0_i32_144] : memref<64x128xf32, #tpu.memory_space<any>> -> memref<1x128xf32, #tpu.memory_space<any>>
      %192 = tpu.memref_squeeze %191 : memref<1x128xf32, #tpu.memory_space<any>> -> memref<128xf32, #tpu.memory_space<any>>
      %c0_i32_145 = arith.constant 0 : i32
      %193 = tpu.memref_slice %arg8[%c0_i32_140, %c6_i32_141, %c0_i32_145] : memref<2x8x128xf32, #tpu.memory_space<vmem>> -> memref<1x1x128xf32, #tpu.memory_space<vmem>>
      %194 = tpu.memref_squeeze %193 : memref<1x1x128xf32, #tpu.memory_space<vmem>> -> memref<128xf32, #tpu.memory_space<vmem>>
      %195 = tpu.memref_slice %arg10[%c0_i32_142, %c0_i32_143] : memref<2x2x!tpu.dma_semaphore, #tpu.memory_space<semaphore_mem>> -> memref<1x1x!tpu.dma_semaphore, #tpu.memory_space<semaphore_mem>>
      %196 = tpu.memref_squeeze %195 : memref<1x1x!tpu.dma_semaphore, #tpu.memory_space<semaphore_mem>> -> memref<!tpu.dma_semaphore, #tpu.memory_space<semaphore_mem>>
      tpu.enqueue_dma source(%192 : memref<128xf32, #tpu.memory_space<any>>) target(%194 : memref<128xf32, #tpu.memory_space<vmem>>) target_semaphore(%196 : memref<!tpu.dma_semaphore, #tpu.memory_space<semaphore_mem>>)
      %c0_i32_146 = arith.constant 0 : i32
      %c6_i32_147 = arith.constant 6 : i32
      %c1_i32_148 = arith.constant 1 : i32
      %c0_i32_149 = arith.constant 0 : i32
      %c0_i32_150 = arith.constant 0 : i32
      %197 = tpu.memref_slice %arg5[%190, %c0_i32_150] : memref<64x128xf32, #tpu.memory_space<any>> -> memref<1x128xf32, #tpu.memory_space<any>>
      %198 = tpu.memref_squeeze %197 : memref<1x128xf32, #tpu.memory_space<any>> -> memref<128xf32, #tpu.memory_space<any>>
      %c0_i32_151 = arith.constant 0 : i32
      %199 = tpu.memref_slice %arg9[%c0_i32_146, %c6_i32_147, %c0_i32_151] : memref<2x8x128xf32, #tpu.memory_space<vmem>> -> memref<1x1x128xf32, #tpu.memory_space<vmem>>
      %200 = tpu.memref_squeeze %199 : memref<1x1x128xf32, #tpu.memory_space<vmem>> -> memref<128xf32, #tpu.memory_space<vmem>>
      %201 = tpu.memref_slice %arg10[%c1_i32_148, %c0_i32_149] : memref<2x2x!tpu.dma_semaphore, #tpu.memory_space<semaphore_mem>> -> memref<1x1x!tpu.dma_semaphore, #tpu.memory_space<semaphore_mem>>
      %202 = tpu.memref_squeeze %201 : memref<1x1x!tpu.dma_semaphore, #tpu.memory_space<semaphore_mem>> -> memref<!tpu.dma_semaphore, #tpu.memory_space<semaphore_mem>>
      tpu.enqueue_dma source(%198 : memref<128xf32, #tpu.memory_space<any>>) target(%200 : memref<128xf32, #tpu.memory_space<vmem>>) target_semaphore(%202 : memref<!tpu.dma_semaphore, #tpu.memory_space<semaphore_mem>>)
      %c7_i32 = arith.constant 7 : i32
      %203 = arith.addi %76, %c7_i32 : i32
      %204 = arith.index_cast %203 : i32 to index
      %205 = memref.load %arg2[%204] : memref<32xi32, #tpu.memory_space<smem>>
      %c7_i32_152 = arith.constant 7 : i32
      %206 = arith.addi %76, %c7_i32_152 : i32
      %207 = arith.index_cast %206 : i32 to index
      %208 = memref.load %arg3[%207] : memref<32xi32, #tpu.memory_space<smem>>
      %c0_i32_153 = arith.constant 0 : i32
      %c7_i32_154 = arith.constant 7 : i32
      %c0_i32_155 = arith.constant 0 : i32
      %c0_i32_156 = arith.constant 0 : i32
      %c0_i32_157 = arith.constant 0 : i32
      %209 = tpu.memref_slice %arg4[%205, %c0_i32_157] : memref<64x128xf32, #tpu.memory_space<any>> -> memref<1x128xf32, #tpu.memory_space<any>>
      %210 = tpu.memref_squeeze %209 : memref<1x128xf32, #tpu.memory_space<any>> -> memref<128xf32, #tpu.memory_space<any>>
      %c0_i32_158 = arith.constant 0 : i32
      %211 = tpu.memref_slice %arg8[%c0_i32_153, %c7_i32_154, %c0_i32_158] : memref<2x8x128xf32, #tpu.memory_space<vmem>> -> memref<1x1x128xf32, #tpu.memory_space<vmem>>
      %212 = tpu.memref_squeeze %211 : memref<1x1x128xf32, #tpu.memory_space<vmem>> -> memref<128xf32, #tpu.memory_space<vmem>>
      %213 = tpu.memref_slice %arg10[%c0_i32_155, %c0_i32_156] : memref<2x2x!tpu.dma_semaphore, #tpu.memory_space<semaphore_mem>> -> memref<1x1x!tpu.dma_semaphore, #tpu.memory_space<semaphore_mem>>
      %214 = tpu.memref_squeeze %213 : memref<1x1x!tpu.dma_semaphore, #tpu.memory_space<semaphore_mem>> -> memref<!tpu.dma_semaphore, #tpu.memory_space<semaphore_mem>>
      tpu.enqueue_dma source(%210 : memref<128xf32, #tpu.memory_space<any>>) target(%212 : memref<128xf32, #tpu.memory_space<vmem>>) target_semaphore(%214 : memref<!tpu.dma_semaphore, #tpu.memory_space<semaphore_mem>>)
      %c0_i32_159 = arith.constant 0 : i32
      %c7_i32_160 = arith.constant 7 : i32
      %c1_i32_161 = arith.constant 1 : i32
      %c0_i32_162 = arith.constant 0 : i32
      %c0_i32_163 = arith.constant 0 : i32
      %215 = tpu.memref_slice %arg5[%208, %c0_i32_163] : memref<64x128xf32, #tpu.memory_space<any>> -> memref<1x128xf32, #tpu.memory_space<any>>
      %216 = tpu.memref_squeeze %215 : memref<1x128xf32, #tpu.memory_space<any>> -> memref<128xf32, #tpu.memory_space<any>>
      %c0_i32_164 = arith.constant 0 : i32
      %217 = tpu.memref_slice %arg9[%c0_i32_159, %c7_i32_160, %c0_i32_164] : memref<2x8x128xf32, #tpu.memory_space<vmem>> -> memref<1x1x128xf32, #tpu.memory_space<vmem>>
      %218 = tpu.memref_squeeze %217 : memref<1x1x128xf32, #tpu.memory_space<vmem>> -> memref<128xf32, #tpu.memory_space<vmem>>
      %219 = tpu.memref_slice %arg10[%c1_i32_161, %c0_i32_162] : memref<2x2x!tpu.dma_semaphore, #tpu.memory_space<semaphore_mem>> -> memref<1x1x!tpu.dma_semaphore, #tpu.memory_space<semaphore_mem>>
      %220 = tpu.memref_squeeze %219 : memref<1x1x!tpu.dma_semaphore, #tpu.memory_space<semaphore_mem>> -> memref<!tpu.dma_semaphore, #tpu.memory_space<semaphore_mem>>
      tpu.enqueue_dma source(%216 : memref<128xf32, #tpu.memory_space<any>>) target(%218 : memref<128xf32, #tpu.memory_space<vmem>>) target_semaphore(%220 : memref<!tpu.dma_semaphore, #tpu.memory_space<semaphore_mem>>)
    } else {
    }
    %c2_i32 = arith.constant 2 : i32
    %c0_i32_1 = arith.constant 0 : i32
    %3 = arith.cmpi eq, %c2_i32, %c0_i32_1 : i32
    %c1_i32 = arith.constant 1 : i32
    %4 = arith.select %3, %c1_i32, %c2_i32 : i32
    %5 = arith.remsi %arg1, %4 : i32
    %c0_i32_2 = arith.constant 0 : i32
    %6 = arith.cmpi ne, %5, %c0_i32_2 : i32
    %c0_i32_3 = arith.constant 0 : i32
    %7 = arith.cmpi slt, %5, %c0_i32_3 : i32
    %c0_i32_4 = arith.constant 0 : i32
    %8 = arith.cmpi slt, %4, %c0_i32_4 : i32
    %9 = arith.xori %7, %8 : i1
    %10 = arith.andi %9, %6 : i1
    %11 = arith.addi %5, %4 : i32
    %12 = arith.select %10, %11, %5 : i32
    %c1_i32_5 = arith.constant 1 : i32
    %13 = arith.addi %arg1, %c1_i32_5 : i32
    %c2_i32_6 = arith.constant 2 : i32
    %14 = arith.cmpi slt, %13, %c2_i32_6 : i32
    %15 = arith.extui %14 : i1 to i32
    %c0_i32_7 = arith.constant 0 : i32
    %16 = arith.cmpi ne, %15, %c0_i32_7 : i32
    scf.if %16 {
      %c1_i32_45 = arith.constant 1 : i32
      %68 = arith.addi %arg1, %c1_i32_45 : i32
      %c1_i32_46 = arith.constant 1 : i32
      %69 = arith.subi %c1_i32_46, %12 : i32
      %c2_i32_47 = arith.constant 2 : i32
      %70 = arith.muli %arg0, %c2_i32_47 : i32
      %71 = arith.addi %70, %68 : i32
      %c8_i32 = arith.constant 8 : i32
      %72 = arith.muli %71, %c8_i32 : i32
      %c0_i32_48 = arith.constant 0 : i32
      %73 = arith.addi %72, %c0_i32_48 : i32
      %74 = arith.index_cast %73 : i32 to index
      %75 = memref.load %arg2[%74] : memref<32xi32, #tpu.memory_space<smem>>
      %c0_i32_49 = arith.constant 0 : i32
      %76 = arith.addi %72, %c0_i32_49 : i32
      %77 = arith.index_cast %76 : i32 to index
      %78 = memref.load %arg3[%77] : memref<32xi32, #tpu.memory_space<smem>>
      %c0_i32_50 = arith.constant 0 : i32
      %c0_i32_51 = arith.constant 0 : i32
      %c0_i32_52 = arith.constant 0 : i32
      %79 = tpu.memref_slice %arg4[%75, %c0_i32_52] : memref<64x128xf32, #tpu.memory_space<any>> -> memref<1x128xf32, #tpu.memory_space<any>>
      %80 = tpu.memref_squeeze %79 : memref<1x128xf32, #tpu.memory_space<any>> -> memref<128xf32, #tpu.memory_space<any>>
      %c0_i32_53 = arith.constant 0 : i32
      %81 = tpu.memref_slice %arg8[%69, %c0_i32_50, %c0_i32_53] : memref<2x8x128xf32, #tpu.memory_space<vmem>> -> memref<1x1x128xf32, #tpu.memory_space<vmem>>
      %82 = tpu.memref_squeeze %81 : memref<1x1x128xf32, #tpu.memory_space<vmem>> -> memref<128xf32, #tpu.memory_space<vmem>>
      %83 = tpu.memref_slice %arg10[%c0_i32_51, %69] : memref<2x2x!tpu.dma_semaphore, #tpu.memory_space<semaphore_mem>> -> memref<1x1x!tpu.dma_semaphore, #tpu.memory_space<semaphore_mem>>
      %84 = tpu.memref_squeeze %83 : memref<1x1x!tpu.dma_semaphore, #tpu.memory_space<semaphore_mem>> -> memref<!tpu.dma_semaphore, #tpu.memory_space<semaphore_mem>>
      tpu.enqueue_dma source(%80 : memref<128xf32, #tpu.memory_space<any>>) target(%82 : memref<128xf32, #tpu.memory_space<vmem>>) target_semaphore(%84 : memref<!tpu.dma_semaphore, #tpu.memory_space<semaphore_mem>>)
      %c0_i32_54 = arith.constant 0 : i32
      %c1_i32_55 = arith.constant 1 : i32
      %c0_i32_56 = arith.constant 0 : i32
      %85 = tpu.memref_slice %arg5[%78, %c0_i32_56] : memref<64x128xf32, #tpu.memory_space<any>> -> memref<1x128xf32, #tpu.memory_space<any>>
      %86 = tpu.memref_squeeze %85 : memref<1x128xf32, #tpu.memory_space<any>> -> memref<128xf32, #tpu.memory_space<any>>
      %c0_i32_57 = arith.constant 0 : i32
      %87 = tpu.memref_slice %arg9[%69, %c0_i32_54, %c0_i32_57] : memref<2x8x128xf32, #tpu.memory_space<vmem>> -> memref<1x1x128xf32, #tpu.memory_space<vmem>>
      %88 = tpu.memref_squeeze %87 : memref<1x1x128xf32, #tpu.memory_space<vmem>> -> memref<128xf32, #tpu.memory_space<vmem>>
      %89 = tpu.memref_slice %arg10[%c1_i32_55, %69] : memref<2x2x!tpu.dma_semaphore, #tpu.memory_space<semaphore_mem>> -> memref<1x1x!tpu.dma_semaphore, #tpu.memory_space<semaphore_mem>>
      %90 = tpu.memref_squeeze %89 : memref<1x1x!tpu.dma_semaphore, #tpu.memory_space<semaphore_mem>> -> memref<!tpu.dma_semaphore, #tpu.memory_space<semaphore_mem>>
      tpu.enqueue_dma source(%86 : memref<128xf32, #tpu.memory_space<any>>) target(%88 : memref<128xf32, #tpu.memory_space<vmem>>) target_semaphore(%90 : memref<!tpu.dma_semaphore, #tpu.memory_space<semaphore_mem>>)
      %c1_i32_58 = arith.constant 1 : i32
      %91 = arith.addi %72, %c1_i32_58 : i32
      %92 = arith.index_cast %91 : i32 to index
      %93 = memref.load %arg2[%92] : memref<32xi32, #tpu.memory_space<smem>>
      %c1_i32_59 = arith.constant 1 : i32
      %94 = arith.addi %72, %c1_i32_59 : i32
      %95 = arith.index_cast %94 : i32 to index
      %96 = memref.load %arg3[%95] : memref<32xi32, #tpu.memory_space<smem>>
      %c1_i32_60 = arith.constant 1 : i32
      %c0_i32_61 = arith.constant 0 : i32
      %c0_i32_62 = arith.constant 0 : i32
      %97 = tpu.memref_slice %arg4[%93, %c0_i32_62] : memref<64x128xf32, #tpu.memory_space<any>> -> memref<1x128xf32, #tpu.memory_space<any>>
      %98 = tpu.memref_squeeze %97 : memref<1x128xf32, #tpu.memory_space<any>> -> memref<128xf32, #tpu.memory_space<any>>
      %c0_i32_63 = arith.constant 0 : i32
      %99 = tpu.memref_slice %arg8[%69, %c1_i32_60, %c0_i32_63] : memref<2x8x128xf32, #tpu.memory_space<vmem>> -> memref<1x1x128xf32, #tpu.memory_space<vmem>>
      %100 = tpu.memref_squeeze %99 : memref<1x1x128xf32, #tpu.memory_space<vmem>> -> memref<128xf32, #tpu.memory_space<vmem>>
      %101 = tpu.memref_slice %arg10[%c0_i32_61, %69] : memref<2x2x!tpu.dma_semaphore, #tpu.memory_space<semaphore_mem>> -> memref<1x1x!tpu.dma_semaphore, #tpu.memory_space<semaphore_mem>>
      %102 = tpu.memref_squeeze %101 : memref<1x1x!tpu.dma_semaphore, #tpu.memory_space<semaphore_mem>> -> memref<!tpu.dma_semaphore, #tpu.memory_space<semaphore_mem>>
      tpu.enqueue_dma source(%98 : memref<128xf32, #tpu.memory_space<any>>) target(%100 : memref<128xf32, #tpu.memory_space<vmem>>) target_semaphore(%102 : memref<!tpu.dma_semaphore, #tpu.memory_space<semaphore_mem>>)
      %c1_i32_64 = arith.constant 1 : i32
      %c1_i32_65 = arith.constant 1 : i32
      %c0_i32_66 = arith.constant 0 : i32
      %103 = tpu.memref_slice %arg5[%96, %c0_i32_66] : memref<64x128xf32, #tpu.memory_space<any>> -> memref<1x128xf32, #tpu.memory_space<any>>
      %104 = tpu.memref_squeeze %103 : memref<1x128xf32, #tpu.memory_space<any>> -> memref<128xf32, #tpu.memory_space<any>>
      %c0_i32_67 = arith.constant 0 : i32
      %105 = tpu.memref_slice %arg9[%69, %c1_i32_64, %c0_i32_67] : memref<2x8x128xf32, #tpu.memory_space<vmem>> -> memref<1x1x128xf32, #tpu.memory_space<vmem>>
      %106 = tpu.memref_squeeze %105 : memref<1x1x128xf32, #tpu.memory_space<vmem>> -> memref<128xf32, #tpu.memory_space<vmem>>
      %107 = tpu.memref_slice %arg10[%c1_i32_65, %69] : memref<2x2x!tpu.dma_semaphore, #tpu.memory_space<semaphore_mem>> -> memref<1x1x!tpu.dma_semaphore, #tpu.memory_space<semaphore_mem>>
      %108 = tpu.memref_squeeze %107 : memref<1x1x!tpu.dma_semaphore, #tpu.memory_space<semaphore_mem>> -> memref<!tpu.dma_semaphore, #tpu.memory_space<semaphore_mem>>
      tpu.enqueue_dma source(%104 : memref<128xf32, #tpu.memory_space<any>>) target(%106 : memref<128xf32, #tpu.memory_space<vmem>>) target_semaphore(%108 : memref<!tpu.dma_semaphore, #tpu.memory_space<semaphore_mem>>)
      %c2_i32_68 = arith.constant 2 : i32
      %109 = arith.addi %72, %c2_i32_68 : i32
      %110 = arith.index_cast %109 : i32 to index
      %111 = memref.load %arg2[%110] : memref<32xi32, #tpu.memory_space<smem>>
      %c2_i32_69 = arith.constant 2 : i32
      %112 = arith.addi %72, %c2_i32_69 : i32
      %113 = arith.index_cast %112 : i32 to index
      %114 = memref.load %arg3[%113] : memref<32xi32, #tpu.memory_space<smem>>
      %c2_i32_70 = arith.constant 2 : i32
      %c0_i32_71 = arith.constant 0 : i32
      %c0_i32_72 = arith.constant 0 : i32
      %115 = tpu.memref_slice %arg4[%111, %c0_i32_72] : memref<64x128xf32, #tpu.memory_space<any>> -> memref<1x128xf32, #tpu.memory_space<any>>
      %116 = tpu.memref_squeeze %115 : memref<1x128xf32, #tpu.memory_space<any>> -> memref<128xf32, #tpu.memory_space<any>>
      %c0_i32_73 = arith.constant 0 : i32
      %117 = tpu.memref_slice %arg8[%69, %c2_i32_70, %c0_i32_73] : memref<2x8x128xf32, #tpu.memory_space<vmem>> -> memref<1x1x128xf32, #tpu.memory_space<vmem>>
      %118 = tpu.memref_squeeze %117 : memref<1x1x128xf32, #tpu.memory_space<vmem>> -> memref<128xf32, #tpu.memory_space<vmem>>
      %119 = tpu.memref_slice %arg10[%c0_i32_71, %69] : memref<2x2x!tpu.dma_semaphore, #tpu.memory_space<semaphore_mem>> -> memref<1x1x!tpu.dma_semaphore, #tpu.memory_space<semaphore_mem>>
      %120 = tpu.memref_squeeze %119 : memref<1x1x!tpu.dma_semaphore, #tpu.memory_space<semaphore_mem>> -> memref<!tpu.dma_semaphore, #tpu.memory_space<semaphore_mem>>
      tpu.enqueue_dma source(%116 : memref<128xf32, #tpu.memory_space<any>>) target(%118 : memref<128xf32, #tpu.memory_space<vmem>>) target_semaphore(%120 : memref<!tpu.dma_semaphore, #tpu.memory_space<semaphore_mem>>)
      %c2_i32_74 = arith.constant 2 : i32
      %c1_i32_75 = arith.constant 1 : i32
      %c0_i32_76 = arith.constant 0 : i32
      %121 = tpu.memref_slice %arg5[%114, %c0_i32_76] : memref<64x128xf32, #tpu.memory_space<any>> -> memref<1x128xf32, #tpu.memory_space<any>>
      %122 = tpu.memref_squeeze %121 : memref<1x128xf32, #tpu.memory_space<any>> -> memref<128xf32, #tpu.memory_space<any>>
      %c0_i32_77 = arith.constant 0 : i32
      %123 = tpu.memref_slice %arg9[%69, %c2_i32_74, %c0_i32_77] : memref<2x8x128xf32, #tpu.memory_space<vmem>> -> memref<1x1x128xf32, #tpu.memory_space<vmem>>
      %124 = tpu.memref_squeeze %123 : memref<1x1x128xf32, #tpu.memory_space<vmem>> -> memref<128xf32, #tpu.memory_space<vmem>>
      %125 = tpu.memref_slice %arg10[%c1_i32_75, %69] : memref<2x2x!tpu.dma_semaphore, #tpu.memory_space<semaphore_mem>> -> memref<1x1x!tpu.dma_semaphore, #tpu.memory_space<semaphore_mem>>
      %126 = tpu.memref_squeeze %125 : memref<1x1x!tpu.dma_semaphore, #tpu.memory_space<semaphore_mem>> -> memref<!tpu.dma_semaphore, #tpu.memory_space<semaphore_mem>>
      tpu.enqueue_dma source(%122 : memref<128xf32, #tpu.memory_space<any>>) target(%124 : memref<128xf32, #tpu.memory_space<vmem>>) target_semaphore(%126 : memref<!tpu.dma_semaphore, #tpu.memory_space<semaphore_mem>>)
      %c3_i32 = arith.constant 3 : i32
      %127 = arith.addi %72, %c3_i32 : i32
      %128 = arith.index_cast %127 : i32 to index
      %129 = memref.load %arg2[%128] : memref<32xi32, #tpu.memory_space<smem>>
      %c3_i32_78 = arith.constant 3 : i32
      %130 = arith.addi %72, %c3_i32_78 : i32
      %131 = arith.index_cast %130 : i32 to index
      %132 = memref.load %arg3[%131] : memref<32xi32, #tpu.memory_space<smem>>
      %c3_i32_79 = arith.constant 3 : i32
      %c0_i32_80 = arith.constant 0 : i32
      %c0_i32_81 = arith.constant 0 : i32
      %133 = tpu.memref_slice %arg4[%129, %c0_i32_81] : memref<64x128xf32, #tpu.memory_space<any>> -> memref<1x128xf32, #tpu.memory_space<any>>
      %134 = tpu.memref_squeeze %133 : memref<1x128xf32, #tpu.memory_space<any>> -> memref<128xf32, #tpu.memory_space<any>>
      %c0_i32_82 = arith.constant 0 : i32
      %135 = tpu.memref_slice %arg8[%69, %c3_i32_79, %c0_i32_82] : memref<2x8x128xf32, #tpu.memory_space<vmem>> -> memref<1x1x128xf32, #tpu.memory_space<vmem>>
      %136 = tpu.memref_squeeze %135 : memref<1x1x128xf32, #tpu.memory_space<vmem>> -> memref<128xf32, #tpu.memory_space<vmem>>
      %137 = tpu.memref_slice %arg10[%c0_i32_80, %69] : memref<2x2x!tpu.dma_semaphore, #tpu.memory_space<semaphore_mem>> -> memref<1x1x!tpu.dma_semaphore, #tpu.memory_space<semaphore_mem>>
      %138 = tpu.memref_squeeze %137 : memref<1x1x!tpu.dma_semaphore, #tpu.memory_space<semaphore_mem>> -> memref<!tpu.dma_semaphore, #tpu.memory_space<semaphore_mem>>
      tpu.enqueue_dma source(%134 : memref<128xf32, #tpu.memory_space<any>>) target(%136 : memref<128xf32, #tpu.memory_space<vmem>>) target_semaphore(%138 : memref<!tpu.dma_semaphore, #tpu.memory_space<semaphore_mem>>)
      %c3_i32_83 = arith.constant 3 : i32
      %c1_i32_84 = arith.constant 1 : i32
      %c0_i32_85 = arith.constant 0 : i32
      %139 = tpu.memref_slice %arg5[%132, %c0_i32_85] : memref<64x128xf32, #tpu.memory_space<any>> -> memref<1x128xf32, #tpu.memory_space<any>>
      %140 = tpu.memref_squeeze %139 : memref<1x128xf32, #tpu.memory_space<any>> -> memref<128xf32, #tpu.memory_space<any>>
      %c0_i32_86 = arith.constant 0 : i32
      %141 = tpu.memref_slice %arg9[%69, %c3_i32_83, %c0_i32_86] : memref<2x8x128xf32, #tpu.memory_space<vmem>> -> memref<1x1x128xf32, #tpu.memory_space<vmem>>
      %142 = tpu.memref_squeeze %141 : memref<1x1x128xf32, #tpu.memory_space<vmem>> -> memref<128xf32, #tpu.memory_space<vmem>>
      %143 = tpu.memref_slice %arg10[%c1_i32_84, %69] : memref<2x2x!tpu.dma_semaphore, #tpu.memory_space<semaphore_mem>> -> memref<1x1x!tpu.dma_semaphore, #tpu.memory_space<semaphore_mem>>
      %144 = tpu.memref_squeeze %143 : memref<1x1x!tpu.dma_semaphore, #tpu.memory_space<semaphore_mem>> -> memref<!tpu.dma_semaphore, #tpu.memory_space<semaphore_mem>>
      tpu.enqueue_dma source(%140 : memref<128xf32, #tpu.memory_space<any>>) target(%142 : memref<128xf32, #tpu.memory_space<vmem>>) target_semaphore(%144 : memref<!tpu.dma_semaphore, #tpu.memory_space<semaphore_mem>>)
      %c4_i32 = arith.constant 4 : i32
      %145 = arith.addi %72, %c4_i32 : i32
      %146 = arith.index_cast %145 : i32 to index
      %147 = memref.load %arg2[%146] : memref<32xi32, #tpu.memory_space<smem>>
      %c4_i32_87 = arith.constant 4 : i32
      %148 = arith.addi %72, %c4_i32_87 : i32
      %149 = arith.index_cast %148 : i32 to index
      %150 = memref.load %arg3[%149] : memref<32xi32, #tpu.memory_space<smem>>
      %c4_i32_88 = arith.constant 4 : i32
      %c0_i32_89 = arith.constant 0 : i32
      %c0_i32_90 = arith.constant 0 : i32
      %151 = tpu.memref_slice %arg4[%147, %c0_i32_90] : memref<64x128xf32, #tpu.memory_space<any>> -> memref<1x128xf32, #tpu.memory_space<any>>
      %152 = tpu.memref_squeeze %151 : memref<1x128xf32, #tpu.memory_space<any>> -> memref<128xf32, #tpu.memory_space<any>>
      %c0_i32_91 = arith.constant 0 : i32
      %153 = tpu.memref_slice %arg8[%69, %c4_i32_88, %c0_i32_91] : memref<2x8x128xf32, #tpu.memory_space<vmem>> -> memref<1x1x128xf32, #tpu.memory_space<vmem>>
      %154 = tpu.memref_squeeze %153 : memref<1x1x128xf32, #tpu.memory_space<vmem>> -> memref<128xf32, #tpu.memory_space<vmem>>
      %155 = tpu.memref_slice %arg10[%c0_i32_89, %69] : memref<2x2x!tpu.dma_semaphore, #tpu.memory_space<semaphore_mem>> -> memref<1x1x!tpu.dma_semaphore, #tpu.memory_space<semaphore_mem>>
      %156 = tpu.memref_squeeze %155 : memref<1x1x!tpu.dma_semaphore, #tpu.memory_space<semaphore_mem>> -> memref<!tpu.dma_semaphore, #tpu.memory_space<semaphore_mem>>
      tpu.enqueue_dma source(%152 : memref<128xf32, #tpu.memory_space<any>>) target(%154 : memref<128xf32, #tpu.memory_space<vmem>>) target_semaphore(%156 : memref<!tpu.dma_semaphore, #tpu.memory_space<semaphore_mem>>)
      %c4_i32_92 = arith.constant 4 : i32
      %c1_i32_93 = arith.constant 1 : i32
      %c0_i32_94 = arith.constant 0 : i32
      %157 = tpu.memref_slice %arg5[%150, %c0_i32_94] : memref<64x128xf32, #tpu.memory_space<any>> -> memref<1x128xf32, #tpu.memory_space<any>>
      %158 = tpu.memref_squeeze %157 : memref<1x128xf32, #tpu.memory_space<any>> -> memref<128xf32, #tpu.memory_space<any>>
      %c0_i32_95 = arith.constant 0 : i32
      %159 = tpu.memref_slice %arg9[%69, %c4_i32_92, %c0_i32_95] : memref<2x8x128xf32, #tpu.memory_space<vmem>> -> memref<1x1x128xf32, #tpu.memory_space<vmem>>
      %160 = tpu.memref_squeeze %159 : memref<1x1x128xf32, #tpu.memory_space<vmem>> -> memref<128xf32, #tpu.memory_space<vmem>>
      %161 = tpu.memref_slice %arg10[%c1_i32_93, %69] : memref<2x2x!tpu.dma_semaphore, #tpu.memory_space<semaphore_mem>> -> memref<1x1x!tpu.dma_semaphore, #tpu.memory_space<semaphore_mem>>
      %162 = tpu.memref_squeeze %161 : memref<1x1x!tpu.dma_semaphore, #tpu.memory_space<semaphore_mem>> -> memref<!tpu.dma_semaphore, #tpu.memory_space<semaphore_mem>>
      tpu.enqueue_dma source(%158 : memref<128xf32, #tpu.memory_space<any>>) target(%160 : memref<128xf32, #tpu.memory_space<vmem>>) target_semaphore(%162 : memref<!tpu.dma_semaphore, #tpu.memory_space<semaphore_mem>>)
      %c5_i32 = arith.constant 5 : i32
      %163 = arith.addi %72, %c5_i32 : i32
      %164 = arith.index_cast %163 : i32 to index
      %165 = memref.load %arg2[%164] : memref<32xi32, #tpu.memory_space<smem>>
      %c5_i32_96 = arith.constant 5 : i32
      %166 = arith.addi %72, %c5_i32_96 : i32
      %167 = arith.index_cast %166 : i32 to index
      %168 = memref.load %arg3[%167] : memref<32xi32, #tpu.memory_space<smem>>
      %c5_i32_97 = arith.constant 5 : i32
      %c0_i32_98 = arith.constant 0 : i32
      %c0_i32_99 = arith.constant 0 : i32
      %169 = tpu.memref_slice %arg4[%165, %c0_i32_99] : memref<64x128xf32, #tpu.memory_space<any>> -> memref<1x128xf32, #tpu.memory_space<any>>
      %170 = tpu.memref_squeeze %169 : memref<1x128xf32, #tpu.memory_space<any>> -> memref<128xf32, #tpu.memory_space<any>>
      %c0_i32_100 = arith.constant 0 : i32
      %171 = tpu.memref_slice %arg8[%69, %c5_i32_97, %c0_i32_100] : memref<2x8x128xf32, #tpu.memory_space<vmem>> -> memref<1x1x128xf32, #tpu.memory_space<vmem>>
      %172 = tpu.memref_squeeze %171 : memref<1x1x128xf32, #tpu.memory_space<vmem>> -> memref<128xf32, #tpu.memory_space<vmem>>
      %173 = tpu.memref_slice %arg10[%c0_i32_98, %69] : memref<2x2x!tpu.dma_semaphore, #tpu.memory_space<semaphore_mem>> -> memref<1x1x!tpu.dma_semaphore, #tpu.memory_space<semaphore_mem>>
      %174 = tpu.memref_squeeze %173 : memref<1x1x!tpu.dma_semaphore, #tpu.memory_space<semaphore_mem>> -> memref<!tpu.dma_semaphore, #tpu.memory_space<semaphore_mem>>
      tpu.enqueue_dma source(%170 : memref<128xf32, #tpu.memory_space<any>>) target(%172 : memref<128xf32, #tpu.memory_space<vmem>>) target_semaphore(%174 : memref<!tpu.dma_semaphore, #tpu.memory_space<semaphore_mem>>)
      %c5_i32_101 = arith.constant 5 : i32
      %c1_i32_102 = arith.constant 1 : i32
      %c0_i32_103 = arith.constant 0 : i32
      %175 = tpu.memref_slice %arg5[%168, %c0_i32_103] : memref<64x128xf32, #tpu.memory_space<any>> -> memref<1x128xf32, #tpu.memory_space<any>>
      %176 = tpu.memref_squeeze %175 : memref<1x128xf32, #tpu.memory_space<any>> -> memref<128xf32, #tpu.memory_space<any>>
      %c0_i32_104 = arith.constant 0 : i32
      %177 = tpu.memref_slice %arg9[%69, %c5_i32_101, %c0_i32_104] : memref<2x8x128xf32, #tpu.memory_space<vmem>> -> memref<1x1x128xf32, #tpu.memory_space<vmem>>
      %178 = tpu.memref_squeeze %177 : memref<1x1x128xf32, #tpu.memory_space<vmem>> -> memref<128xf32, #tpu.memory_space<vmem>>
      %179 = tpu.memref_slice %arg10[%c1_i32_102, %69] : memref<2x2x!tpu.dma_semaphore, #tpu.memory_space<semaphore_mem>> -> memref<1x1x!tpu.dma_semaphore, #tpu.memory_space<semaphore_mem>>
      %180 = tpu.memref_squeeze %179 : memref<1x1x!tpu.dma_semaphore, #tpu.memory_space<semaphore_mem>> -> memref<!tpu.dma_semaphore, #tpu.memory_space<semaphore_mem>>
      tpu.enqueue_dma source(%176 : memref<128xf32, #tpu.memory_space<any>>) target(%178 : memref<128xf32, #tpu.memory_space<vmem>>) target_semaphore(%180 : memref<!tpu.dma_semaphore, #tpu.memory_space<semaphore_mem>>)
      %c6_i32 = arith.constant 6 : i32
      %181 = arith.addi %72, %c6_i32 : i32
      %182 = arith.index_cast %181 : i32 to index
      %183 = memref.load %arg2[%182] : memref<32xi32, #tpu.memory_space<smem>>
      %c6_i32_105 = arith.constant 6 : i32
      %184 = arith.addi %72, %c6_i32_105 : i32
      %185 = arith.index_cast %184 : i32 to index
      %186 = memref.load %arg3[%185] : memref<32xi32, #tpu.memory_space<smem>>
      %c6_i32_106 = arith.constant 6 : i32
      %c0_i32_107 = arith.constant 0 : i32
      %c0_i32_108 = arith.constant 0 : i32
      %187 = tpu.memref_slice %arg4[%183, %c0_i32_108] : memref<64x128xf32, #tpu.memory_space<any>> -> memref<1x128xf32, #tpu.memory_space<any>>
      %188 = tpu.memref_squeeze %187 : memref<1x128xf32, #tpu.memory_space<any>> -> memref<128xf32, #tpu.memory_space<any>>
      %c0_i32_109 = arith.constant 0 : i32
      %189 = tpu.memref_slice %arg8[%69, %c6_i32_106, %c0_i32_109] : memref<2x8x128xf32, #tpu.memory_space<vmem>> -> memref<1x1x128xf32, #tpu.memory_space<vmem>>
      %190 = tpu.memref_squeeze %189 : memref<1x1x128xf32, #tpu.memory_space<vmem>> -> memref<128xf32, #tpu.memory_space<vmem>>
      %191 = tpu.memref_slice %arg10[%c0_i32_107, %69] : memref<2x2x!tpu.dma_semaphore, #tpu.memory_space<semaphore_mem>> -> memref<1x1x!tpu.dma_semaphore, #tpu.memory_space<semaphore_mem>>
      %192 = tpu.memref_squeeze %191 : memref<1x1x!tpu.dma_semaphore, #tpu.memory_space<semaphore_mem>> -> memref<!tpu.dma_semaphore, #tpu.memory_space<semaphore_mem>>
      tpu.enqueue_dma source(%188 : memref<128xf32, #tpu.memory_space<any>>) target(%190 : memref<128xf32, #tpu.memory_space<vmem>>) target_semaphore(%192 : memref<!tpu.dma_semaphore, #tpu.memory_space<semaphore_mem>>)
      %c6_i32_110 = arith.constant 6 : i32
      %c1_i32_111 = arith.constant 1 : i32
      %c0_i32_112 = arith.constant 0 : i32
      %193 = tpu.memref_slice %arg5[%186, %c0_i32_112] : memref<64x128xf32, #tpu.memory_space<any>> -> memref<1x128xf32, #tpu.memory_space<any>>
      %194 = tpu.memref_squeeze %193 : memref<1x128xf32, #tpu.memory_space<any>> -> memref<128xf32, #tpu.memory_space<any>>
      %c0_i32_113 = arith.constant 0 : i32
      %195 = tpu.memref_slice %arg9[%69, %c6_i32_110, %c0_i32_113] : memref<2x8x128xf32, #tpu.memory_space<vmem>> -> memref<1x1x128xf32, #tpu.memory_space<vmem>>
      %196 = tpu.memref_squeeze %195 : memref<1x1x128xf32, #tpu.memory_space<vmem>> -> memref<128xf32, #tpu.memory_space<vmem>>
      %197 = tpu.memref_slice %arg10[%c1_i32_111, %69] : memref<2x2x!tpu.dma_semaphore, #tpu.memory_space<semaphore_mem>> -> memref<1x1x!tpu.dma_semaphore, #tpu.memory_space<semaphore_mem>>
      %198 = tpu.memref_squeeze %197 : memref<1x1x!tpu.dma_semaphore, #tpu.memory_space<semaphore_mem>> -> memref<!tpu.dma_semaphore, #tpu.memory_space<semaphore_mem>>
      tpu.enqueue_dma source(%194 : memref<128xf32, #tpu.memory_space<any>>) target(%196 : memref<128xf32, #tpu.memory_space<vmem>>) target_semaphore(%198 : memref<!tpu.dma_semaphore, #tpu.memory_space<semaphore_mem>>)
      %c7_i32 = arith.constant 7 : i32
      %199 = arith.addi %72, %c7_i32 : i32
      %200 = arith.index_cast %199 : i32 to index
      %201 = memref.load %arg2[%200] : memref<32xi32, #tpu.memory_space<smem>>
      %c7_i32_114 = arith.constant 7 : i32
      %202 = arith.addi %72, %c7_i32_114 : i32
      %203 = arith.index_cast %202 : i32 to index
      %204 = memref.load %arg3[%203] : memref<32xi32, #tpu.memory_space<smem>>
      %c7_i32_115 = arith.constant 7 : i32
      %c0_i32_116 = arith.constant 0 : i32
      %c0_i32_117 = arith.constant 0 : i32
      %205 = tpu.memref_slice %arg4[%201, %c0_i32_117] : memref<64x128xf32, #tpu.memory_space<any>> -> memref<1x128xf32, #tpu.memory_space<any>>
      %206 = tpu.memref_squeeze %205 : memref<1x128xf32, #tpu.memory_space<any>> -> memref<128xf32, #tpu.memory_space<any>>
      %c0_i32_118 = arith.constant 0 : i32
      %207 = tpu.memref_slice %arg8[%69, %c7_i32_115, %c0_i32_118] : memref<2x8x128xf32, #tpu.memory_space<vmem>> -> memref<1x1x128xf32, #tpu.memory_space<vmem>>
      %208 = tpu.memref_squeeze %207 : memref<1x1x128xf32, #tpu.memory_space<vmem>> -> memref<128xf32, #tpu.memory_space<vmem>>
      %209 = tpu.memref_slice %arg10[%c0_i32_116, %69] : memref<2x2x!tpu.dma_semaphore, #tpu.memory_space<semaphore_mem>> -> memref<1x1x!tpu.dma_semaphore, #tpu.memory_space<semaphore_mem>>
      %210 = tpu.memref_squeeze %209 : memref<1x1x!tpu.dma_semaphore, #tpu.memory_space<semaphore_mem>> -> memref<!tpu.dma_semaphore, #tpu.memory_space<semaphore_mem>>
      tpu.enqueue_dma source(%206 : memref<128xf32, #tpu.memory_space<any>>) target(%208 : memref<128xf32, #tpu.memory_space<vmem>>) target_semaphore(%210 : memref<!tpu.dma_semaphore, #tpu.memory_space<semaphore_mem>>)
      %c7_i32_119 = arith.constant 7 : i32
      %c1_i32_120 = arith.constant 1 : i32
      %c0_i32_121 = arith.constant 0 : i32
      %211 = tpu.memref_slice %arg5[%204, %c0_i32_121] : memref<64x128xf32, #tpu.memory_space<any>> -> memref<1x128xf32, #tpu.memory_space<any>>
      %212 = tpu.memref_squeeze %211 : memref<1x128xf32, #tpu.memory_space<any>> -> memref<128xf32, #tpu.memory_space<any>>
      %c0_i32_122 = arith.constant 0 : i32
      %213 = tpu.memref_slice %arg9[%69, %c7_i32_119, %c0_i32_122] : memref<2x8x128xf32, #tpu.memory_space<vmem>> -> memref<1x1x128xf32, #tpu.memory_space<vmem>>
      %214 = tpu.memref_squeeze %213 : memref<1x1x128xf32, #tpu.memory_space<vmem>> -> memref<128xf32, #tpu.memory_space<vmem>>
      %215 = tpu.memref_slice %arg10[%c1_i32_120, %69] : memref<2x2x!tpu.dma_semaphore, #tpu.memory_space<semaphore_mem>> -> memref<1x1x!tpu.dma_semaphore, #tpu.memory_space<semaphore_mem>>
      %216 = tpu.memref_squeeze %215 : memref<1x1x!tpu.dma_semaphore, #tpu.memory_space<semaphore_mem>> -> memref<!tpu.dma_semaphore, #tpu.memory_space<semaphore_mem>>
      tpu.enqueue_dma source(%212 : memref<128xf32, #tpu.memory_space<any>>) target(%214 : memref<128xf32, #tpu.memory_space<vmem>>) target_semaphore(%216 : memref<!tpu.dma_semaphore, #tpu.memory_space<semaphore_mem>>)
    } else {
    }
    %c0_i32_8 = arith.constant 0 : i32
    %c0_i32_9 = arith.constant 0 : i32
    %c0_i32_10 = arith.constant 0 : i32
    %17 = tpu.memref_slice %arg8[%12, %c0_i32_9, %c0_i32_10] : memref<2x8x128xf32, #tpu.memory_space<vmem>> -> memref<1x8x128xf32, #tpu.memory_space<vmem>>
    %18 = tpu.memref_squeeze %17 : memref<1x8x128xf32, #tpu.memory_space<vmem>> -> memref<8x128xf32, #tpu.memory_space<vmem>>
    %c0_i32_11 = arith.constant 0 : i32
    %c0_i32_12 = arith.constant 0 : i32
    %19 = tpu.memref_slice %arg8[%12, %c0_i32_11, %c0_i32_12] : memref<2x8x128xf32, #tpu.memory_space<vmem>> -> memref<1x8x128xf32, #tpu.memory_space<vmem>>
    %20 = tpu.memref_squeeze %19 : memref<1x8x128xf32, #tpu.memory_space<vmem>> -> memref<8x128xf32, #tpu.memory_space<vmem>>
    %21 = tpu.memref_slice %arg10[%c0_i32_8, %12] : memref<2x2x!tpu.dma_semaphore, #tpu.memory_space<semaphore_mem>> -> memref<1x1x!tpu.dma_semaphore, #tpu.memory_space<semaphore_mem>>
    %22 = tpu.memref_squeeze %21 : memref<1x1x!tpu.dma_semaphore, #tpu.memory_space<semaphore_mem>> -> memref<!tpu.dma_semaphore, #tpu.memory_space<semaphore_mem>>
    tpu.wait_dma2 semaphore(%22 : memref<!tpu.dma_semaphore, #tpu.memory_space<semaphore_mem>>) src(%18 : memref<8x128xf32, #tpu.memory_space<vmem>>) dst(%20 : memref<8x128xf32, #tpu.memory_space<vmem>>)
    %c1_i32_13 = arith.constant 1 : i32
    %c0_i32_14 = arith.constant 0 : i32
    %c0_i32_15 = arith.constant 0 : i32
    %23 = tpu.memref_slice %arg9[%12, %c0_i32_14, %c0_i32_15] : memref<2x8x128xf32, #tpu.memory_space<vmem>> -> memref<1x8x128xf32, #tpu.memory_space<vmem>>
    %24 = tpu.memref_squeeze %23 : memref<1x8x128xf32, #tpu.memory_space<vmem>> -> memref<8x128xf32, #tpu.memory_space<vmem>>
    %c0_i32_16 = arith.constant 0 : i32
    %c0_i32_17 = arith.constant 0 : i32
    %25 = tpu.memref_slice %arg9[%12, %c0_i32_16, %c0_i32_17] : memref<2x8x128xf32, #tpu.memory_space<vmem>> -> memref<1x8x128xf32, #tpu.memory_space<vmem>>
    %26 = tpu.memref_squeeze %25 : memref<1x8x128xf32, #tpu.memory_space<vmem>> -> memref<8x128xf32, #tpu.memory_space<vmem>>
    %27 = tpu.memref_slice %arg10[%c1_i32_13, %12] : memref<2x2x!tpu.dma_semaphore, #tpu.memory_space<semaphore_mem>> -> memref<1x1x!tpu.dma_semaphore, #tpu.memory_space<semaphore_mem>>
    %28 = tpu.memref_squeeze %27 : memref<1x1x!tpu.dma_semaphore, #tpu.memory_space<semaphore_mem>> -> memref<!tpu.dma_semaphore, #tpu.memory_space<semaphore_mem>>
    tpu.wait_dma2 semaphore(%28 : memref<!tpu.dma_semaphore, #tpu.memory_space<semaphore_mem>>) src(%24 : memref<8x128xf32, #tpu.memory_space<vmem>>) dst(%26 : memref<8x128xf32, #tpu.memory_space<vmem>>)
    %29 = arith.index_cast %12 : i32 to index
    %c0 = arith.constant 0 : index
    %c0_18 = arith.constant 0 : index
    %30 = vector.load %arg8[%29, %c0, %c0_18] : memref<2x8x128xf32, #tpu.memory_space<vmem>>, vector<1x8x128xf32>
    %31 = vector.shape_cast %30 : vector<1x8x128xf32> to vector<8x128xf32>
    %32 = arith.index_cast %12 : i32 to index
    %c0_19 = arith.constant 0 : index
    %c0_20 = arith.constant 0 : index
    %33 = vector.load %arg9[%32, %c0_19, %c0_20] : memref<2x8x128xf32, #tpu.memory_space<vmem>>, vector<1x8x128xf32>
    %34 = vector.shape_cast %33 : vector<1x8x128xf32> to vector<8x128xf32>
    %35 = arith.mulf %31, %34 : vector<8x128xf32>
    %cst = arith.constant dense<0.000000e+00> : vector<8xf32>
    %36 = vector.multi_reduction <add>, %35, %cst [1] : vector<8x128xf32> to vector<8xf32>
    %37 = vector.shape_cast %36 : vector<8xf32> to vector<8x1xf32>
    %c0_21 = arith.constant 0 : index
    %c0_22 = arith.constant 0 : index
    %38 = vector.load %arg6[%c0_21, %c0_22] : memref<8x4xf32, #tpu.memory_space<vmem>>, vector<8x4xf32>
    %39 = vector.extract_strided_slice %38 {offsets = [0, 0], sizes = [8, 1], strides = [1, 1]} : vector<8x4xf32> to vector<8x1xf32>
    %40 = vector.extract_strided_slice %38 {offsets = [0, 1], sizes = [8, 1], strides = [1, 1]} : vector<8x4xf32> to vector<8x1xf32>
    %41 = arith.addf %39, %40 : vector<8x1xf32>
    %42 = vector.extract_strided_slice %38 {offsets = [0, 2], sizes = [8, 1], strides = [1, 1]} : vector<8x4xf32> to vector<8x1xf32>
    %43 = math.log %42 : vector<8x1xf32>
    %44 = arith.subf %37, %43 : vector<8x1xf32>
    %45 = vector.extract_strided_slice %38 {offsets = [0, 3], sizes = [8, 1], strides = [1, 1]} : vector<8x4xf32> to vector<8x1xf32>
    %c0_23 = arith.constant 0 : index
    %c0_24 = arith.constant 0 : index
    %46 = vector.load %arg11[%c0_23, %c0_24] : memref<8x1xf32, #tpu.memory_space<vmem>>, vector<8x1xf32>
    %47 = arith.addf %46, %41 : vector<8x1xf32>
    %c0_25 = arith.constant 0 : index
    %c0_26 = arith.constant 0 : index
    %48 = vector.load %arg11[%c0_25, %c0_26] : memref<8x1xf32, #tpu.memory_space<vmem>>, vector<8x1xf32>
    tpu.vector_store %arg11[%c0_25, %c0_26], %47 {strides = array<i32>} : memref<8x1xf32, #tpu.memory_space<vmem>>, vector<8x1xf32>,
    %c0_27 = arith.constant 0 : index
    %c0_28 = arith.constant 0 : index
    %49 = vector.load %arg12[%c0_27, %c0_28] : memref<8x1xf32, #tpu.memory_space<vmem>>, vector<8x1xf32>
    %50 = arith.mulf %41, %41 : vector<8x1xf32>
    %51 = arith.addf %49, %50 : vector<8x1xf32>
    %c0_29 = arith.constant 0 : index
    %c0_30 = arith.constant 0 : index
    %52 = vector.load %arg12[%c0_29, %c0_30] : memref<8x1xf32, #tpu.memory_space<vmem>>, vector<8x1xf32>
    tpu.vector_store %arg12[%c0_29, %c0_30], %51 {strides = array<i32>} : memref<8x1xf32, #tpu.memory_space<vmem>>, vector<8x1xf32>,
    %c0_31 = arith.constant 0 : index
    %c0_32 = arith.constant 0 : index
    %53 = vector.load %arg13[%c0_31, %c0_32] : memref<8x1xf32, #tpu.memory_space<vmem>>, vector<8x1xf32>
    %54 = arith.addf %53, %45 : vector<8x1xf32>
    %c0_33 = arith.constant 0 : index
    %c0_34 = arith.constant 0 : index
    %55 = vector.load %arg13[%c0_33, %c0_34] : memref<8x1xf32, #tpu.memory_space<vmem>>, vector<8x1xf32>
    tpu.vector_store %arg13[%c0_33, %c0_34], %54 {strides = array<i32>} : memref<8x1xf32, #tpu.memory_space<vmem>>, vector<8x1xf32>,
    %c0_35 = arith.constant 0 : index
    %c0_36 = arith.constant 0 : index
    %56 = vector.load %arg14[%c0_35, %c0_36] : memref<8x1xf32, #tpu.memory_space<vmem>>, vector<8x1xf32>
    %57 = arith.mulf %45, %44 : vector<8x1xf32>
    %58 = arith.addf %56, %57 : vector<8x1xf32>
    %c0_37 = arith.constant 0 : index
    %c0_38 = arith.constant 0 : index
    %59 = vector.load %arg14[%c0_37, %c0_38] : memref<8x1xf32, #tpu.memory_space<vmem>>, vector<8x1xf32>
    tpu.vector_store %arg14[%c0_37, %c0_38], %58 {strides = array<i32>} : memref<8x1xf32, #tpu.memory_space<vmem>>, vector<8x1xf32>,
    %c0_39 = arith.constant 0 : index
    %c0_40 = arith.constant 0 : index
    %60 = vector.load %arg15[%c0_39, %c0_40] : memref<8x1xf32, #tpu.memory_space<vmem>>, vector<8x1xf32>
    %61 = arith.mulf %45, %44 : vector<8x1xf32>
    %62 = arith.mulf %61, %44 : vector<8x1xf32>
    %63 = arith.addf %60, %62 : vector<8x1xf32>
    %c0_41 = arith.constant 0 : index
    %c0_42 = arith.constant 0 : index
    %64 = vector.load %arg15[%c0_41, %c0_42] : memref<8x1xf32, #tpu.memory_space<vmem>>, vector<8x1xf32>
    tpu.vector_store %arg15[%c0_41, %c0_42], %63 {strides = array<i32>} : memref<8x1xf32, #tpu.memory_space<vmem>>, vector<8x1xf32>,
    %c1_i32_43 = arith.constant 1 : i32
    %65 = arith.cmpi eq, %arg1, %c1_i32_43 : i32
    %66 = arith.extui %65 : i1 to i32
    %c0_i32_44 = arith.constant 0 : i32
    %67 = arith.cmpi ne, %66, %c0_i32_44 : i32
    scf.if %67 {
      %c0_45 = arith.constant 0 : index
      %c0_46 = arith.constant 0 : index
      %68 = vector.load %arg11[%c0_45, %c0_46] : memref<8x1xf32, #tpu.memory_space<vmem>>, vector<8x1xf32>
      %cst_47 = arith.constant dense<0.000000e+00> : vector<1xf32>
      %69 = vector.multi_reduction <add>, %68, %cst_47 [0] : vector<8x1xf32> to vector<1xf32>
      %70 = vector.shape_cast %69 : vector<1xf32> to vector<1x1xf32>
      %c0_48 = arith.constant 0 : index
      %c0_49 = arith.constant 0 : index
      %71 = vector.load %arg12[%c0_48, %c0_49] : memref<8x1xf32, #tpu.memory_space<vmem>>, vector<8x1xf32>
      %cst_50 = arith.constant dense<0.000000e+00> : vector<1xf32>
      %72 = vector.multi_reduction <add>, %71, %cst_50 [0] : vector<8x1xf32> to vector<1xf32>
      %73 = vector.shape_cast %72 : vector<1xf32> to vector<1x1xf32>
      %c0_51 = arith.constant 0 : index
      %c0_52 = arith.constant 0 : index
      %74 = vector.load %arg13[%c0_51, %c0_52] : memref<8x1xf32, #tpu.memory_space<vmem>>, vector<8x1xf32>
      %cst_53 = arith.constant dense<0.000000e+00> : vector<1xf32>
      %75 = vector.multi_reduction <add>, %74, %cst_53 [0] : vector<8x1xf32> to vector<1xf32>
      %76 = vector.shape_cast %75 : vector<1xf32> to vector<1x1xf32>
      %c0_54 = arith.constant 0 : index
      %c0_55 = arith.constant 0 : index
      %77 = vector.load %arg14[%c0_54, %c0_55] : memref<8x1xf32, #tpu.memory_space<vmem>>, vector<8x1xf32>
      %cst_56 = arith.constant dense<0.000000e+00> : vector<1xf32>
      %78 = vector.multi_reduction <add>, %77, %cst_56 [0] : vector<8x1xf32> to vector<1xf32>
      %79 = vector.shape_cast %78 : vector<1xf32> to vector<1x1xf32>
      %c0_57 = arith.constant 0 : index
      %c0_58 = arith.constant 0 : index
      %80 = vector.load %arg15[%c0_57, %c0_58] : memref<8x1xf32, #tpu.memory_space<vmem>>, vector<8x1xf32>
      %cst_59 = arith.constant dense<0.000000e+00> : vector<1xf32>
      %81 = vector.multi_reduction <add>, %80, %cst_59 [0] : vector<8x1xf32> to vector<1xf32>
      %82 = vector.shape_cast %81 : vector<1xf32> to vector<1x1xf32>
      %83 = tpu.concatenate %70, %73, %76, %79, %82 in 1 : vector<1x1xf32>, vector<1x1xf32>, vector<1x1xf32>, vector<1x1xf32>, vector<1x1xf32> -> vector<1x5xf32>
      %84 = vector.shape_cast %83 : vector<1x5xf32> to vector<1x1x5xf32>
      %c0_60 = arith.constant 0 : index
      %c0_61 = arith.constant 0 : index
      %c0_62 = arith.constant 0 : index
      %85 = vector.load %arg7[%c0_60, %c0_61, %c0_62] : memref<1x1x5xf32, #tpu.memory_space<vmem>>, vector<1x1x5xf32>
      tpu.vector_store %arg7[%c0_60, %c0_61, %c0_62], %84 {strides = array<i32>} : memref<1x1x5xf32, #tpu.memory_space<vmem>>, vector<1x1x5xf32>,
    } else {
    }
    return
  }
  func.func @transform_2(%arg0: i32, %arg1: i32, %arg2: memref<32xi32, #tpu.memory_space<smem>>, %arg3: memref<32xi32, #tpu.memory_space<smem>>) -> (i32, i32) {
    %c2_i32 = arith.constant 2 : i32
    %0 = arith.muli %arg0, %c2_i32 : i32
    %1 = arith.addi %0, %arg1 : i32
    %c0_i32 = arith.constant 0 : i32
    %c0_i32_0 = arith.constant 0 : i32
    return %1, %c0_i32 : i32, i32
  }
  func.func @transform_3(%arg0: i32, %arg1: i32, %arg2: memref<32xi32, #tpu.memory_space<smem>>, %arg3: memref<32xi32, #tpu.memory_space<smem>>) -> (i32, i32, i32) {
    %c0_i32 = arith.constant 0 : i32
    %c0_i32_0 = arith.constant 0 : i32
    %c0_i32_1 = arith.constant 0 : i32
    return %arg0, %c0_i32, %c0_i32_0 : i32, i32, i32
  }
}

</mosaic_0001>

<llo_original>
// kernel: tpu_custom_call.1
$region0: #{tpu_custom_call.1}
  #allocation0 [shape = 'u32[]', space=smem, size = 0x4, offset = 0x4, fixed_abs, tag = 'smem constant byte address 0x4 - core index']
  #allocation1 [shape = 'u32[72,128]{1,0:T(1,128)}', space=vmem, size = 0x9000, scoped, tag = 'internal scratch']
  #allocation2 [shape = 'f32[2,8,128]{2,1,0:T(8,128)}', space=vmem, size = 0x2000, scoped, tag = 'scratch operand']
  #allocation3 [shape = 'f32[2,8,128]{2,1,0:T(8,128)}', space=vmem, size = 0x2000, scoped, tag = 'scratch operand']
  #allocation4 [shape = 's32[4]{0}', space=sflag, size = 0x10, scoped, tag = 'scratch operand']
  #allocation5 [shape = 'f32[8,1]{1,0:T(8,128)}', space=vmem, size = 0x1000, scoped, tag = 'scratch operand']
  #allocation6 [shape = 'f32[8,1]{1,0:T(8,128)}', space=vmem, size = 0x1000, scoped, tag = 'scratch operand']
  #allocation7 [shape = 'f32[8,1]{1,0:T(8,128)}', space=vmem, size = 0x1000, scoped, tag = 'scratch operand']
  #allocation8 [shape = 'f32[8,1]{1,0:T(8,128)}', space=vmem, size = 0x1000, scoped, tag = 'scratch operand']
  #allocation9 [shape = 'f32[8,1]{1,0:T(8,128)}', space=vmem, size = 0x1000, scoped, tag = 'scratch operand']
  #allocation10 [shape = 's32[1]{0}', space=sflag, size = 0x4, scoped, tag = 'scoped memory for tpu_custom_call.1']
  #allocation11 [shape = 'u8[512]{0}', space=smem, size = 0x200, scoped, tag = 'prefetched SMEM operand 0']
  #allocation12 [shape = 'u8[512]{0}', space=smem, size = 0x200, scoped, tag = 'prefetched SMEM operand 1']
  #allocation15 [shape = 's32[]', space=sflag, size = 0x4, offset = 0, fixed_abs, tag = 'sflag constant byte address 0x0 - dummy sync flag']
  #allocation16 [shape = 's32[]', space=sflag, size = 0x4, offset = 0, fixed_abs, tag = 'sflag constant byte address 0x0 - dummy sync flag']
  #allocation17 [shape = 'u32[]', space=smem, size = 0x4, offset = 0x44, fixed_abs, tag = 'smem constant byte address 0x44 - assertion arg 0']
  #allocation18 [shape = 'u32[]', space=smem, size = 0x4, offset = 0x48, fixed_abs, tag = 'smem constant byte address 0x48 - assertion arg 1']
  #allocation19 [shape = 's32[]', space=sflag, size = 0x4, offset = 0, fixed_abs, tag = 'sflag constant byte address 0x0 - dummy sync flag']
  #allocation20 [shape = 's32[]', space=sflag, size = 0x4, offset = 0, fixed_abs, tag = 'sflag constant byte address 0x0 - dummy sync flag']
  #allocation21 [shape = 's32[]', space=sflag, size = 0x4, offset = 0, fixed_abs, tag = 'sflag constant byte address 0x0 - dummy sync flag']
  #allocation22 [shape = 's32[]', space=sflag, size = 0x4, offset = 0, fixed_abs, tag = 'sflag constant byte address 0x0 - dummy sync flag']
  #allocation23 [shape = 's32[]', space=sflag, size = 0x4, offset = 0, fixed_abs, tag = 'sflag constant byte address 0x0 - dummy sync flag']
  #allocation24 [shape = 's32[]', space=sflag, size = 0x4, offset = 0, fixed_abs, tag = 'sflag constant byte address 0x0 - dummy sync flag']
  #allocation25 [shape = 's32[]', space=sflag, size = 0x4, offset = 0, fixed_abs, tag = 'sflag constant byte address 0x0 - dummy sync flag']
  #allocation26 [shape = 's32[]', space=sflag, size = 0x4, offset = 0, fixed_abs, tag = 'sflag constant byte address 0x0 - dummy sync flag']
  #allocation27 [shape = 's32[]', space=sflag, size = 0x4, offset = 0, fixed_abs, tag = 'sflag constant byte address 0x0 - dummy sync flag']
  #allocation28 [shape = 's32[]', space=sflag, size = 0x4, offset = 0, fixed_abs, tag = 'sflag constant byte address 0x0 - dummy sync flag']
  #allocation29 [shape = 's32[]', space=sflag, size = 0x4, offset = 0, fixed_abs, tag = 'sflag constant byte address 0x0 - dummy sync flag']
  #allocation30 [shape = 's32[]', space=sflag, size = 0x4, offset = 0, fixed_abs, tag = 'sflag constant byte address 0x0 - dummy sync flag']
  #allocation31 [shape = 's32[]', space=sflag, size = 0x4, offset = 0, fixed_abs, tag = 'sflag constant byte address 0x0 - dummy sync flag']
  #allocation32 [shape = 's32[]', space=sflag, size = 0x4, offset = 0, fixed_abs, tag = 'sflag constant byte address 0x0 - dummy sync flag']
  #allocation33 [shape = 's32[]', space=sflag, size = 0x4, offset = 0, fixed_abs, tag = 'sflag constant byte address 0x0 - dummy sync flag']
  #allocation34 [shape = 's32[]', space=sflag, size = 0x4, offset = 0, fixed_abs, tag = 'sflag constant byte address 0x0 - dummy sync flag']
  #allocation35 [shape = 's32[]', space=sflag, size = 0x4, offset = 0, fixed_abs, tag = 'sflag constant byte address 0x0 - dummy sync flag']
  #allocation36 [shape = 's32[]', space=sflag, size = 0x4, offset = 0, fixed_abs, tag = 'sflag constant byte address 0x0 - dummy sync flag']
  #allocation37 [shape = 's32[]', space=sflag, size = 0x4, offset = 0, fixed_abs, tag = 'sflag constant byte address 0x0 - dummy sync flag']
  #allocation38 [shape = 's32[]', space=sflag, size = 0x4, offset = 0, fixed_abs, tag = 'sflag constant byte address 0x0 - dummy sync flag']
  #allocation39 [shape = 's32[]', space=sflag, size = 0x4, offset = 0, fixed_abs, tag = 'sflag constant byte address 0x0 - dummy sync flag']
  #allocation40 [shape = 's32[]', space=sflag, size = 0x4, offset = 0, fixed_abs, tag = 'sflag constant byte address 0x0 - dummy sync flag']
  #allocation41 [shape = 's32[]', space=sflag, size = 0x4, offset = 0, fixed_abs, tag = 'sflag constant byte address 0x0 - dummy sync flag']
  #allocation42 [shape = 's32[]', space=sflag, size = 0x4, offset = 0, fixed_abs, tag = 'sflag constant byte address 0x0 - dummy sync flag']
  #allocation43 [shape = 's32[]', space=sflag, size = 0x4, offset = 0, fixed_abs, tag = 'sflag constant byte address 0x0 - dummy sync flag']
  #allocation44 [shape = 's32[]', space=sflag, size = 0x4, offset = 0, fixed_abs, tag = 'sflag constant byte address 0x0 - dummy sync flag']
  #allocation45 [shape = 's32[]', space=sflag, size = 0x4, offset = 0, fixed_abs, tag = 'sflag constant byte address 0x0 - dummy sync flag']
  #allocation46 [shape = 's32[]', space=sflag, size = 0x4, offset = 0, fixed_abs, tag = 'sflag constant byte address 0x0 - dummy sync flag']
  #allocation47 [shape = 's32[]', space=sflag, size = 0x4, offset = 0, fixed_abs, tag = 'sflag constant byte address 0x0 - dummy sync flag']
  #allocation48 [shape = 's32[]', space=sflag, size = 0x4, offset = 0, fixed_abs, tag = 'sflag constant byte address 0x0 - dummy sync flag']
  #allocation49 [shape = 's32[]', space=sflag, size = 0x4, offset = 0, fixed_abs, tag = 'sflag constant byte address 0x0 - dummy sync flag']
  #allocation50 [shape = 's32[]', space=sflag, size = 0x4, offset = 0, fixed_abs, tag = 'sflag constant byte address 0x0 - dummy sync flag']
  #allocation51 [shape = 's32[]', space=sflag, size = 0x4, offset = 0, fixed_abs, tag = 'sflag constant byte address 0x0 - dummy sync flag']
  #allocation52 [shape = 's32[]', space=sflag, size = 0x4, offset = 0, fixed_abs, tag = 'sflag constant byte address 0x0 - dummy sync flag']
  #allocation53 [shape = 's32[]', space=sflag, size = 0x4, offset = 0, fixed_abs, tag = 'sflag constant byte address 0x0 - dummy sync flag']
  #allocation54 [shape = 's32[]', space=sflag, size = 0x4, offset = 0, fixed_abs, tag = 'sflag constant byte address 0x0 - dummy sync flag']
  #allocation55 [shape = 's32[]', space=sflag, size = 0x4, offset = 0, fixed_abs, tag = 'sflag constant byte address 0x0 - dummy sync flag']
  #allocation56 [shape = 's32[]', space=sflag, size = 0x4, offset = 0, fixed_abs, tag = 'sflag constant byte address 0x0 - dummy sync flag']
  #allocation57 [shape = 's32[]', space=sflag, size = 0x4, offset = 0, fixed_abs, tag = 'sflag constant byte address 0x0 - dummy sync flag']
  #allocation58 [shape = 's32[]', space=sflag, size = 0x4, offset = 0, fixed_abs, tag = 'sflag constant byte address 0x0 - dummy sync flag']
  #allocation59 [shape = 's32[]', space=sflag, size = 0x4, offset = 0, fixed_abs, tag = 'sflag constant byte address 0x0 - dummy sync flag']
  #allocation60 [shape = 's32[]', space=sflag, size = 0x4, offset = 0, fixed_abs, tag = 'sflag constant byte address 0x0 - dummy sync flag']
  #allocation61 [shape = 's32[]', space=sflag, size = 0x4, offset = 0, fixed_abs, tag = 'sflag constant byte address 0x0 - dummy sync flag']
  #allocation62 [shape = 's32[]', space=sflag, size = 0x4, offset = 0, fixed_abs, tag = 'sflag constant byte address 0x0 - dummy sync flag']
  #allocation63 [shape = 's32[]', space=sflag, size = 0x4, offset = 0, fixed_abs, tag = 'sflag constant byte address 0x0 - dummy sync flag']
  #allocation64 [shape = 's32[]', space=sflag, size = 0x4, offset = 0, fixed_abs, tag = 'sflag constant byte address 0x0 - dummy sync flag']
  #allocation65 [shape = 's32[]', space=sflag, size = 0x4, offset = 0, fixed_abs, tag = 'sflag constant byte address 0x0 - dummy sync flag']
  #allocation66 [shape = 's32[]', space=sflag, size = 0x4, offset = 0, fixed_abs, tag = 'sflag constant byte address 0x0 - dummy sync flag']
  #allocation67 [shape = 's32[]', space=sflag, size = 0x4, offset = 0, fixed_abs, tag = 'sflag constant byte address 0x0 - dummy sync flag']
  #allocation68 [shape = 's32[]', space=sflag, size = 0x4, offset = 0, fixed_abs, tag = 'sflag constant byte address 0x0 - dummy sync flag']
  #allocation69 [shape = 's32[]', space=sflag, size = 0x4, offset = 0, fixed_abs, tag = 'sflag constant byte address 0x0 - dummy sync flag']
  #allocation70 [shape = 's32[]', space=sflag, size = 0x4, offset = 0, fixed_abs, tag = 'sflag constant byte address 0x0 - dummy sync flag']
  #allocation71 [shape = 's32[]', space=sflag, size = 0x4, offset = 0, fixed_abs, tag = 'sflag constant byte address 0x0 - dummy sync flag']
  #allocation72 [shape = 's32[]', space=sflag, size = 0x4, offset = 0, fixed_abs, tag = 'sflag constant byte address 0x0 - dummy sync flag']
  #allocation73 [shape = 's32[]', space=sflag, size = 0x4, offset = 0, fixed_abs, tag = 'sflag constant byte address 0x0 - dummy sync flag']
  #allocation74 [shape = 's32[]', space=sflag, size = 0x4, offset = 0, fixed_abs, tag = 'sflag constant byte address 0x0 - dummy sync flag']
  #allocation75 [shape = 's32[]', space=sflag, size = 0x4, offset = 0, fixed_abs, tag = 'sflag constant byte address 0x0 - dummy sync flag']
  #allocation76 [shape = 's32[]', space=sflag, size = 0x4, offset = 0, fixed_abs, tag = 'sflag constant byte address 0x0 - dummy sync flag']
  #allocation77 [shape = 's32[]', space=sflag, size = 0x4, offset = 0, fixed_abs, tag = 'sflag constant byte address 0x0 - dummy sync flag']
  #allocation78 [shape = 's32[]', space=sflag, size = 0x4, offset = 0, fixed_abs, tag = 'sflag constant byte address 0x0 - dummy sync flag']
  #allocation79 [shape = 's32[]', space=sflag, size = 0x4, offset = 0, fixed_abs, tag = 'sflag constant byte address 0x0 - dummy sync flag']
  #allocation80 [shape = 's32[]', space=sflag, size = 0x4, offset = 0, fixed_abs, tag = 'sflag constant byte address 0x0 - dummy sync flag']
  %s0 = inlined_call_operand.vmem [shape: s32[32], index: 0, kind: input, shape index: {}]
  %s1 = inlined_call_operand.vmem [shape: s32[32], index: 1, kind: input, shape index: {}]
  %s2 = inlined_call_operand.hbm [shape: f32[64,128], index: 2, kind: input, shape index: {}]
  %s3 = inlined_call_operand.hbm [shape: f32[64,128], index: 3, kind: input, shape index: {}]
  %s4 = inlined_call_operand.vmem [shape: f32[32,4], index: 4, kind: input, shape index: {}]
  %s5 = inlined_call_operand.hbm [shape: f32[2,1,5], index: 5, kind: output, shape index: {}]
  %s6 = sld [smem:[#allocation0]]
  $region177: #{tpu_custom_call.1} parent=0
    _
  %s8 = ssub.s32 1, %s6
  %s9 = scalar_select 0, %s8, %s6
  %s11 = sshll.u32 %s0, 4
  %s12 = int_to_ptr.vmem [resolvable:$true] %s11
  %14 = dma.vmem_to_smem %s12, 16, [#allocation11], [#allocation10]
  %s16 = sshll.u32 %s1, 4
  %s17 = int_to_ptr.vmem [resolvable:$true] %s16
  %19 = dma.vmem_to_smem %s17, 16, [#allocation12], [#allocation10]
  %21 = dma.done [#allocation10], 32
  %22 = sfence
  $region1: #{tpu_custom_call.1} parent=0
    #allocation13 [shape = 'u8[1024]{0}', space=vmem, size = 0x400, scoped, tag = 'output window, operand 0']
    #allocation14 [shape = 's32[2]{0}', space=sflag, size = 0x8, scoped, tag = 'scoped memory for tpu_custom_call.1']
    %23 = vsyncpa [#allocation14], 0
    %s24 = scalar_lea.sflag [#allocation14], 1
    %25 = vsyncpa %s24, 0
    loop: start=0, step=1, limit=6
    $region2: #{tpu_custom_call.1} parent=1 // loop_pre_header
      _
    $region3: #{tpu_custom_call.1} parent=1 // loop_header
      %s27 = sphi 0, %s31
      %p28 = scmp.ge.s32.totalorder %s27, 6
      %s34 = sphi 0, %s46
      %s35 = sphi 0, %s42
      %s36 = sphi 0, %s34
      %s37 = sphi 0, %s35
      %s38 = sphi 0, %s36
      %s39 = sphi 0, %s37
      %s53 = sphi 0, %s55
      %s56 = sphi 0, %s53
      %s57 = sphi 0, %s56
      %s73 = sphi 0, %s57
      %s79 = sphi 0, %s81
      %s82 = sphi 0, %s79
      %s83 = sphi 0, %s82
      %s99 = sphi 0, %s83
    $region4: #{tpu_custom_call.1} parent=1 // loop_header_branch
      %30 = sbr.rel (%p28) target = $region8
    $region5: #{tpu_custom_call.1} parent=1 // loop_body
      %s32 = ssub.s32 %s27, 1
      %s33 = ssub.s32 %s27, 2
      %s40 = sadd.s32 1, %s35
      %p41 = scmp.ge.s32.totalorder %s40, 2
      %s42 = scalar_select %p41, 0, %s40
      %s43 = sadd.s32 1, %s34
      %s44 = scalar_select %p41, %s43, %s34
      %p45 = scmp.ge.s32.totalorder %s44, 2
      %s46 = scalar_select %p45, 0, %s44
      %s47 = smul.u32 %s34, 2
      %s48 = sadd.s32 %s47, %s35
      %s49 = smul.u32 %s46, 2
      %s50 = sadd.s32 %s49, %s42
      %s51 = ssub.s32 %s48, %s50
      %p52 = scmp.eq.s32.totalorder %s51, 0
      %s54 = sadd.s32 %s53, 1
      %s55 = scalar_select %p52, %s53, %s54
      %p58 = pneg %p52
      %p59 = scmp.eq.s32.totalorder %s27, 3
      %p60 = por %p58, %p59
      %p61 = scmp.ne.s32.totalorder %s53, %s56
      %p62 = scmp.eq.s32.totalorder %s27, 0
      %p63 = por %p61, %p62
      %p64 = scmp.ne.s32.totalorder %s53, %s56
      %p65 = scmp.eq.s32.totalorder %s32, 3
      %p66 = por %p64, %p65
      %p67 = scmp.ne.s32.totalorder %s56, %s57
      %p68 = scmp.eq.s32.totalorder %s32, 0
      %p69 = por %p67, %p68
      %p70 = scmp.ne.s32.totalorder %s56, %s57
      %p71 = scmp.eq.s32.totalorder %s33, 3
      %p72 = por %p70, %p71
      %p74 = scmp.ne.s32.totalorder %s57, %s73
      %p75 = scmp.eq.s32.totalorder %s33, 0
      %p76 = por %p74, %p75
      %s77 = ssub.s32 %s34, %s46
      %p78 = scmp.eq.s32.totalorder %s77, 0
      %s80 = sadd.s32 %s79, 1
      %s81 = scalar_select %p78, %s79, %s80
      %p84 = pneg %p78
      %p85 = scmp.eq.s32.totalorder %s27, 3
      %p86 = por %p84, %p85
      %p87 = scmp.ne.s32.totalorder %s79, %s82
      %p88 = scmp.eq.s32.totalorder %s27, 0
      %p89 = por %p87, %p88
      %p90 = scmp.ne.s32.totalorder %s79, %s82
      %p91 = scmp.eq.s32.totalorder %s32, 3
      %p92 = por %p90, %p91
      %p93 = scmp.ne.s32.totalorder %s82, %s83
      %p94 = scmp.eq.s32.totalorder %s32, 0
      %p95 = por %p93, %p94
      %p96 = scmp.ne.s32.totalorder %s82, %s83
      %p97 = scmp.eq.s32.totalorder %s33, 3
      %p98 = por %p96, %p97
      %p100 = scmp.ne.s32.totalorder %s83, %s99
      %p101 = scmp.eq.s32.totalorder %s33, 0
      %p102 = por %p100, %p101
      %p103 = scmp.le.s32.totalorder 1, %s27
      %p104 = scmp.lt.s32.totalorder %s27, 5
      %p105 = pnand %p103, %p104
      %p106 = pneg %p105
      // Predicated region
      $region9: #{tpu_custom_call.1} parent=5 // pred_check
        _
      $region10: #{tpu_custom_call.1} parent=5 // pred_check_branch
        %108 = sbr.rel (%p105) target = $region12
      $region11: #{tpu_custom_call.1} parent=5 // pred_region
        %s109 = ssub.s32 %s27, 1
      $region12: #{tpu_custom_call.1} parent=5 // pred_fallthru
        _
      %p110 = scmp.lt.s32.totalorder %s27, 4
      // Predicated region
      $region13: #{tpu_custom_call.1} parent=5 // pred_check
        %p111 = pneg %p110
      $region14: #{tpu_custom_call.1} parent=5 // pred_check_branch
        %113 = sbr.rel (%p111) target = $region16
      $region15: #{tpu_custom_call.1} parent=5 // pred_region
        // Predicated region
        $region17: #{tpu_custom_call.1} parent=15 // pred_check
          %p114 = pneg %p63
        $region18: #{tpu_custom_call.1} parent=15 // pred_check_branch
          %116 = sbr.rel (%p114) target = $region20
        $region19: #{tpu_custom_call.1} parent=15 // pred_region
          %s117 = smul.u32 %s34, 2
          %s118 = sadd.s32 %s117, %s35
          %p119 = scmp.lt.s32.totalorder %s118, 3
          %s120 = scalar_select %p119, %s118, 3
          %s121 = smul.addr %s120, 8
          %s122 = scalar_lea.vmem %s4, %s121
          %s123 = smul.u32 %s34, 2
          %s124 = sadd.s32 %s123, %s35
        $region20: #{tpu_custom_call.1} parent=15 // pred_fallthru
          _
      $region16: #{tpu_custom_call.1} parent=5 // pred_fallthru
        _
      %p125 = scmp.le.s32.totalorder 1, %s27
      %p126 = scmp.lt.s32.totalorder %s27, 5
      %p127 = pnand %p125, %p126
      %p128 = pneg %p127
      // Predicated region
      $region21: #{tpu_custom_call.1} parent=5 // pred_check
        _
      $region22: #{tpu_custom_call.1} parent=5 // pred_check_branch
        %130 = sbr.rel (%p127) target = $region24
      $region23: #{tpu_custom_call.1} parent=5 // pred_region
        %s131 = ssub.s32 %s27, 1
        %s132 = smul.u32 %s36, 2
        %s133 = sadd.s32 %s132, %s37
        %p134 = scmp.lt.s32.totalorder %s133, 3
        %s135 = scalar_select %p134, %s133, 3
        %s136 = smul.addr %s135, 8
        %s137 = scalar_lea.vmem %s4, %s136
        %p138 = pneg %p69
        %p139 = pneg %p66
        %p140 = pneg %p95
        %p141 = pneg %p92
        %s142 = sand.u32 %s82, 1
        %s143 = scalar_lea.sflag [#allocation14], %s142
        %s144 = sand.u32 %s82, 1
        %s145 = scalar_lea.vmem [#allocation13], %s144
        %s146 = smul.u32 %s36, 2
        %s147 = sadd.s32 %s146, %s37
        %p148 = scmp.lt.s32.totalorder %s147, 3
        %s149 = scalar_select %p148, %s147, 3
        %s150 = smul.addr %s149, 8
        %s151 = scalar_lea.vmem %s4, %s150
        %s152 = smul.u32 %s36, 2
        %s153 = sadd.s32 %s152, %s37
        %p154 = scmp.eq.s32.totalorder %s37, 0
        // Predicated region
        $region25: #{tpu_custom_call.1} parent=23 // pred_check
          %p155 = pneg %p154
        $region26: #{tpu_custom_call.1} parent=23 // pred_check_branch
          %157 = sbr.rel (%p155) target = $region28
        $region27: #{tpu_custom_call.1} parent=23 // pred_region
          %vm158 = vcmask 7168
          %159 = vst.msk [vmem:[#allocation5] sm:$0xff] %vm158, 0.0
          %160 = vst.msk [vmem:[#allocation6] sm:$0xff] %vm158, 0.0
          %161 = vst.msk [vmem:[#allocation7] sm:$0xff] %vm158, 0.0
          %162 = vst.msk [vmem:[#allocation8] sm:$0xff] %vm158, 0.0
          %163 = vst.msk [vmem:[#allocation9] sm:$0xff] %vm158, 0.0
          %s164 = smul.u32 %s36, 16
          %s165 = sld [smem:[#allocation11 + %s164]]
          %s166 = sld [smem:[#allocation12 + %s164]]
          %s167 = scalar_lea.hbm %s2, %s165
          // Predicated region
          $region29: #{tpu_custom_call.1} parent=27 // pred_check
            _
          $region30: #{tpu_custom_call.1} parent=27 // pred_check_branch
            %169 = sbr.rel target = $region32
          $region31: #{tpu_custom_call.1} parent=27 // pred_region
            %170 = sst [smem:[#allocation17]] [#allocation16]
            %171 = sst [smem:[#allocation18]] [#allocation15]
          $region32: #{tpu_custom_call.1} parent=27 // pred_fallthru
            _
          %173 = shalt.err (0)
          %s175 = sshll.u32 %s167, 4
          %s176 = int_to_ptr.hbm [resolvable:$true] %s175
          %s177 = sshll.u32 [#allocation2], 4
          %s178 = int_to_ptr.vmem [resolvable:$true] %s177
          %180 = dma.hbm_to_vmem [thread:$0]  %s176, 16, %s178, [#allocation4]
          %s181 = scalar_lea.hbm %s3, %s166
          %s182 = scalar_lea.sflag [#allocation4], 2
          // Predicated region
          $region33: #{tpu_custom_call.1} parent=27 // pred_check
            _
          $region34: #{tpu_custom_call.1} parent=27 // pred_check_branch
            %184 = sbr.rel target = $region36
          $region35: #{tpu_custom_call.1} parent=27 // pred_region
            %185 = sst [smem:[#allocation17]] [#allocation20]
            %186 = sst [smem:[#allocation18]] [#allocation19]
          $region36: #{tpu_custom_call.1} parent=27 // pred_fallthru
            _
          %188 = shalt.err (0)
          %s190 = sshll.u32 %s181, 4
          %s191 = int_to_ptr.hbm [resolvable:$true] %s190
          %s192 = sshll.u32 [#allocation3], 4
          %s193 = int_to_ptr.vmem [resolvable:$true] %s192
          %195 = dma.hbm_to_vmem [thread:$0]  %s191, 16, %s193, %s182
          %s196 = sadd.s32 %s164, 1
          %s197 = sld [smem:[#allocation11 + %s196]]
          %s198 = sld [smem:[#allocation12 + %s196]]
          %s199 = scalar_lea.hbm %s2, %s197
          %s200 = scalar_lea.vmem [#allocation2], 1
          // Predicated region
          $region37: #{tpu_custom_call.1} parent=27 // pred_check
            _
          $region38: #{tpu_custom_call.1} parent=27 // pred_check_branch
            %202 = sbr.rel target = $region40
          $region39: #{tpu_custom_call.1} parent=27 // pred_region
            %203 = sst [smem:[#allocation17]] [#allocation22]
            %204 = sst [smem:[#allocation18]] [#allocation21]
          $region40: #{tpu_custom_call.1} parent=27 // pred_fallthru
            _
          %206 = shalt.err (0)
          %s208 = sshll.u32 %s199, 4
          %s209 = int_to_ptr.hbm [resolvable:$true] %s208
          %s210 = sshll.u32 %s200, 4
          %s211 = int_to_ptr.vmem [resolvable:$true] %s210
          %213 = dma.hbm_to_vmem [thread:$0]  %s209, 16, %s211, [#allocation4]
          %s214 = scalar_lea.hbm %s3, %s198
          %s215 = scalar_lea.vmem [#allocation3], 1
          // Predicated region
          $region41: #{tpu_custom_call.1} parent=27 // pred_check
            _
          $region42: #{tpu_custom_call.1} parent=27 // pred_check_branch
            %217 = sbr.rel target = $region44
          $region43: #{tpu_custom_call.1} parent=27 // pred_region
            %218 = sst [smem:[#allocation17]] [#allocation24]
            %219 = sst [smem:[#allocation18]] [#allocation23]
          $region44: #{tpu_custom_call.1} parent=27 // pred_fallthru
            _
          %221 = shalt.err (0)
          %s223 = sshll.u32 %s214, 4
          %s224 = int_to_ptr.hbm [resolvable:$true] %s223
          %s225 = sshll.u32 %s215, 4
          %s226 = int_to_ptr.vmem [resolvable:$true] %s225
          %228 = dma.hbm_to_vmem [thread:$0]  %s224, 16, %s226, %s182
          %s229 = sadd.s32 %s164, 2
          %s230 = sld [smem:[#allocation11 + %s229]]
          %s231 = sld [smem:[#allocation12 + %s229]]
          %s232 = scalar_lea.hbm %s2, %s230
          %s233 = scalar_lea.vmem [#allocation2], 2
          // Predicated region
          $region45: #{tpu_custom_call.1} parent=27 // pred_check
            _
          $region46: #{tpu_custom_call.1} parent=27 // pred_check_branch
            %235 = sbr.rel target = $region48
          $region47: #{tpu_custom_call.1} parent=27 // pred_region
            %236 = sst [smem:[#allocation17]] [#allocation26]
            %237 = sst [smem:[#allocation18]] [#allocation25]
          $region48: #{tpu_custom_call.1} parent=27 // pred_fallthru
            _
          %239 = shalt.err (0)
          %s241 = sshll.u32 %s232, 4
          %s242 = int_to_ptr.hbm [resolvable:$true] %s241
          %s243 = sshll.u32 %s233, 4
          %s244 = int_to_ptr.vmem [resolvable:$true] %s243
          %246 = dma.hbm_to_vmem [thread:$0]  %s242, 16, %s244, [#allocation4]
          %s247 = scalar_lea.hbm %s3, %s231
          %s248 = scalar_lea.vmem [#allocation3], 2
          // Predicated region
          $region49: #{tpu_custom_call.1} parent=27 // pred_check
            _
          $region50: #{tpu_custom_call.1} parent=27 // pred_check_branch
            %250 = sbr.rel target = $region52
          $region51: #{tpu_custom_call.1} parent=27 // pred_region
            %251 = sst [smem:[#allocation17]] [#allocation28]
            %252 = sst [smem:[#allocation18]] [#allocation27]
          $region52: #{tpu_custom_call.1} parent=27 // pred_fallthru
            _
          %254 = shalt.err (0)
          %s256 = sshll.u32 %s247, 4
          %s257 = int_to_ptr.hbm [resolvable:$true] %s256
          %s258 = sshll.u32 %s248, 4
          %s259 = int_to_ptr.vmem [resolvable:$true] %s258
          %261 = dma.hbm_to_vmem [thread:$0]  %s257, 16, %s259, %s182
          %s262 = sadd.s32 %s164, 3
          %s263 = sld [smem:[#allocation11 + %s262]]
          %s264 = sld [smem:[#allocation12 + %s262]]
          %s265 = scalar_lea.hbm %s2, %s263
          %s266 = scalar_lea.vmem [#allocation2], 3
          // Predicated region
          $region53: #{tpu_custom_call.1} parent=27 // pred_check
            _
          $region54: #{tpu_custom_call.1} parent=27 // pred_check_branch
            %268 = sbr.rel target = $region56
          $region55: #{tpu_custom_call.1} parent=27 // pred_region
            %269 = sst [smem:[#allocation17]] [#allocation30]
            %270 = sst [smem:[#allocation18]] [#allocation29]
          $region56: #{tpu_custom_call.1} parent=27 // pred_fallthru
            _
          %272 = shalt.err (0)
          %s274 = sshll.u32 %s265, 4
          %s275 = int_to_ptr.hbm [resolvable:$true] %s274
          %s276 = sshll.u32 %s266, 4
          %s277 = int_to_ptr.vmem [resolvable:$true] %s276
          %279 = dma.hbm_to_vmem [thread:$0]  %s275, 16, %s277, [#allocation4]
          %s280 = scalar_lea.hbm %s3, %s264
          %s281 = scalar_lea.vmem [#allocation3], 3
          // Predicated region
          $region57: #{tpu_custom_call.1} parent=27 // pred_check
            _
          $region58: #{tpu_custom_call.1} parent=27 // pred_check_branch
            %283 = sbr.rel target = $region60
          $region59: #{tpu_custom_call.1} parent=27 // pred_region
            %284 = sst [smem:[#allocation17]] [#allocation32]
            %285 = sst [smem:[#allocation18]] [#allocation31]
          $region60: #{tpu_custom_call.1} parent=27 // pred_fallthru
            _
          %287 = shalt.err (0)
          %s289 = sshll.u32 %s280, 4
          %s290 = int_to_ptr.hbm [resolvable:$true] %s289
          %s291 = sshll.u32 %s281, 4
          %s292 = int_to_ptr.vmem [resolvable:$true] %s291
          %294 = dma.hbm_to_vmem [thread:$0]  %s290, 16, %s292, %s182
          %s295 = sadd.s32 %s164, 4
          %s296 = sld [smem:[#allocation11 + %s295]]
          %s297 = sld [smem:[#allocation12 + %s295]]
          %s298 = scalar_lea.hbm %s2, %s296
          %s299 = scalar_lea.vmem [#allocation2], 4
          // Predicated region
          $region61: #{tpu_custom_call.1} parent=27 // pred_check
            _
          $region62: #{tpu_custom_call.1} parent=27 // pred_check_branch
            %301 = sbr.rel target = $region64
          $region63: #{tpu_custom_call.1} parent=27 // pred_region
            %302 = sst [smem:[#allocation17]] [#allocation34]
            %303 = sst [smem:[#allocation18]] [#allocation33]
          $region64: #{tpu_custom_call.1} parent=27 // pred_fallthru
            _
          %305 = shalt.err (0)
          %s307 = sshll.u32 %s298, 4
          %s308 = int_to_ptr.hbm [resolvable:$true] %s307
          %s309 = sshll.u32 %s299, 4
          %s310 = int_to_ptr.vmem [resolvable:$true] %s309
          %312 = dma.hbm_to_vmem [thread:$0]  %s308, 16, %s310, [#allocation4]
          %s313 = scalar_lea.hbm %s3, %s297
          %s314 = scalar_lea.vmem [#allocation3], 4
          // Predicated region
          $region65: #{tpu_custom_call.1} parent=27 // pred_check
            _
          $region66: #{tpu_custom_call.1} parent=27 // pred_check_branch
            %316 = sbr.rel target = $region68
          $region67: #{tpu_custom_call.1} parent=27 // pred_region
            %317 = sst [smem:[#allocation17]] [#allocation36]
            %318 = sst [smem:[#allocation18]] [#allocation35]
          $region68: #{tpu_custom_call.1} parent=27 // pred_fallthru
            _
          %320 = shalt.err (0)
          %s322 = sshll.u32 %s313, 4
          %s323 = int_to_ptr.hbm [resolvable:$true] %s322
          %s324 = sshll.u32 %s314, 4
          %s325 = int_to_ptr.vmem [resolvable:$true] %s324
          %327 = dma.hbm_to_vmem [thread:$0]  %s323, 16, %s325, %s182
          %s328 = sadd.s32 %s164, 5
          %s329 = sld [smem:[#allocation11 + %s328]]
          %s330 = sld [smem:[#allocation12 + %s328]]
          %s331 = scalar_lea.hbm %s2, %s329
          %s332 = scalar_lea.vmem [#allocation2], 5
          // Predicated region
          $region69: #{tpu_custom_call.1} parent=27 // pred_check
            _
          $region70: #{tpu_custom_call.1} parent=27 // pred_check_branch
            %334 = sbr.rel target = $region72
          $region71: #{tpu_custom_call.1} parent=27 // pred_region
            %335 = sst [smem:[#allocation17]] [#allocation38]
            %336 = sst [smem:[#allocation18]] [#allocation37]
          $region72: #{tpu_custom_call.1} parent=27 // pred_fallthru
            _
          %338 = shalt.err (0)
          %s340 = sshll.u32 %s331, 4
          %s341 = int_to_ptr.hbm [resolvable:$true] %s340
          %s342 = sshll.u32 %s332, 4
          %s343 = int_to_ptr.vmem [resolvable:$true] %s342
          %345 = dma.hbm_to_vmem [thread:$0]  %s341, 16, %s343, [#allocation4]
          %s346 = scalar_lea.hbm %s3, %s330
          %s347 = scalar_lea.vmem [#allocation3], 5
          // Predicated region
          $region73: #{tpu_custom_call.1} parent=27 // pred_check
            _
          $region74: #{tpu_custom_call.1} parent=27 // pred_check_branch
            %349 = sbr.rel target = $region76
          $region75: #{tpu_custom_call.1} parent=27 // pred_region
            %350 = sst [smem:[#allocation17]] [#allocation40]
            %351 = sst [smem:[#allocation18]] [#allocation39]
          $region76: #{tpu_custom_call.1} parent=27 // pred_fallthru
            _
          %353 = shalt.err (0)
          %s355 = sshll.u32 %s346, 4
          %s356 = int_to_ptr.hbm [resolvable:$true] %s355
          %s357 = sshll.u32 %s347, 4
          %s358 = int_to_ptr.vmem [resolvable:$true] %s357
          %360 = dma.hbm_to_vmem [thread:$0]  %s356, 16, %s358, %s182
          %s361 = sadd.s32 %s164, 6
          %s362 = sld [smem:[#allocation11 + %s361]]
          %s363 = sld [smem:[#allocation12 + %s361]]
          %s364 = scalar_lea.hbm %s2, %s362
          %s365 = scalar_lea.vmem [#allocation2], 6
          // Predicated region
          $region77: #{tpu_custom_call.1} parent=27 // pred_check
            _
          $region78: #{tpu_custom_call.1} parent=27 // pred_check_branch
            %367 = sbr.rel target = $region80
          $region79: #{tpu_custom_call.1} parent=27 // pred_region
            %368 = sst [smem:[#allocation17]] [#allocation42]
            %369 = sst [smem:[#allocation18]] [#allocation41]
          $region80: #{tpu_custom_call.1} parent=27 // pred_fallthru
            _
          %371 = shalt.err (0)
          %s373 = sshll.u32 %s364, 4
          %s374 = int_to_ptr.hbm [resolvable:$true] %s373
          %s375 = sshll.u32 %s365, 4
          %s376 = int_to_ptr.vmem [resolvable:$true] %s375
          %378 = dma.hbm_to_vmem [thread:$0]  %s374, 16, %s376, [#allocation4]
          %s379 = scalar_lea.hbm %s3, %s363
          %s380 = scalar_lea.vmem [#allocation3], 6
          // Predicated region
          $region81: #{tpu_custom_call.1} parent=27 // pred_check
            _
          $region82: #{tpu_custom_call.1} parent=27 // pred_check_branch
            %382 = sbr.rel target = $region84
          $region83: #{tpu_custom_call.1} parent=27 // pred_region
            %383 = sst [smem:[#allocation17]] [#allocation44]
            %384 = sst [smem:[#allocation18]] [#allocation43]
          $region84: #{tpu_custom_call.1} parent=27 // pred_fallthru
            _
          %386 = shalt.err (0)
          %s388 = sshll.u32 %s379, 4
          %s389 = int_to_ptr.hbm [resolvable:$true] %s388
          %s390 = sshll.u32 %s380, 4
          %s391 = int_to_ptr.vmem [resolvable:$true] %s390
          %393 = dma.hbm_to_vmem [thread:$0]  %s389, 16, %s391, %s182
          %s394 = sadd.s32 %s164, 7
          %s395 = sld [smem:[#allocation11 + %s394]]
          %s396 = sld [smem:[#allocation12 + %s394]]
          %s397 = scalar_lea.hbm %s2, %s395
          %s398 = scalar_lea.vmem [#allocation2], 7
          // Predicated region
          $region85: #{tpu_custom_call.1} parent=27 // pred_check
            _
          $region86: #{tpu_custom_call.1} parent=27 // pred_check_branch
            %400 = sbr.rel target = $region88
          $region87: #{tpu_custom_call.1} parent=27 // pred_region
            %401 = sst [smem:[#allocation17]] [#allocation46]
            %402 = sst [smem:[#allocation18]] [#allocation45]
          $region88: #{tpu_custom_call.1} parent=27 // pred_fallthru
            _
          %404 = shalt.err (0)
          %s406 = sshll.u32 %s397, 4
          %s407 = int_to_ptr.hbm [resolvable:$true] %s406
          %s408 = sshll.u32 %s398, 4
          %s409 = int_to_ptr.vmem [resolvable:$true] %s408
          %411 = dma.hbm_to_vmem [thread:$0]  %s407, 16, %s409, [#allocation4]
          %s412 = scalar_lea.hbm %s3, %s396
          %s413 = scalar_lea.vmem [#allocation3], 7
          // Predicated region
          $region89: #{tpu_custom_call.1} parent=27 // pred_check
            _
          $region90: #{tpu_custom_call.1} parent=27 // pred_check_branch
            %415 = sbr.rel target = $region92
          $region91: #{tpu_custom_call.1} parent=27 // pred_region
            %416 = sst [smem:[#allocation17]] [#allocation48]
            %417 = sst [smem:[#allocation18]] [#allocation47]
          $region92: #{tpu_custom_call.1} parent=27 // pred_fallthru
            _
          %419 = shalt.err (0)
          %s421 = sshll.u32 %s412, 4
          %s422 = int_to_ptr.hbm [resolvable:$true] %s421
          %s423 = sshll.u32 %s413, 4
          %s424 = int_to_ptr.vmem [resolvable:$true] %s423
          %426 = dma.hbm_to_vmem [thread:$0]  %s422, 16, %s424, %s182
        $region28: #{tpu_custom_call.1} parent=23 // pred_fallthru
          _
        %p427 = scmp.lt.s32.totalorder %s37, 0
        %s428 = ssub.s32 0, %s37
        %s429 = scalar_select %p427, %s428, %s37
        %s430 = sand.u32 %s429, 1
        %s431 = ssub.s32 0, %s430
        %s432 = scalar_select %p427, %s431, %s430
        %p433 = scmp.ne.s32.totalorder %s432, 0
        %p434 = scmp.lt.s32.totalorder %s432, 0
        %p435 = pnand %p434, %p433
        %p436 = pneg %p435
        %s437 = sadd.s32 %s432, 2
        %s438 = scalar_select %p436, %s437, %s432
        %s439 = sadd.s32 %s37, 1
        %p440 = scmp.lt.s32.totalorder %s439, 2
        // Predicated region
        $region93: #{tpu_custom_call.1} parent=23 // pred_check
          %p441 = pneg %p440
        $region94: #{tpu_custom_call.1} parent=23 // pred_check_branch
          %443 = sbr.rel (%p441) target = $region96
        $region95: #{tpu_custom_call.1} parent=23 // pred_region
          %s444 = ssub.s32 1, %s438
          %s445 = smul.u32 %s36, 2
          %s446 = sadd.s32 %s445, %s439
          %s447 = smul.u32 %s446, 8
          %s448 = sld [smem:[#allocation11 + %s447]]
          %s449 = sld [smem:[#allocation12 + %s447]]
          %s450 = scalar_lea.hbm %s2, %s448
          %s451 = smul.u32 %s444, 8
          %s452 = scalar_lea.vmem [#allocation2], %s451
          %s453 = scalar_lea.sflag [#allocation4], %s444
          // Predicated region
          $region97: #{tpu_custom_call.1} parent=95 // pred_check
            _
          $region98: #{tpu_custom_call.1} parent=95 // pred_check_branch
            %455 = sbr.rel target = $region100
          $region99: #{tpu_custom_call.1} parent=95 // pred_region
            %456 = sst [smem:[#allocation17]] [#allocation50]
            %457 = sst [smem:[#allocation18]] [#allocation49]
          $region100: #{tpu_custom_call.1} parent=95 // pred_fallthru
            _
          %459 = shalt.err (0)
          %s461 = sshll.u32 %s450, 4
          %s462 = int_to_ptr.hbm [resolvable:$true] %s461
          %s463 = sshll.u32 %s452, 4
          %s464 = int_to_ptr.vmem [resolvable:$true] %s463
          %466 = dma.hbm_to_vmem [thread:$0]  %s462, 16, %s464, %s453
          %s467 = scalar_lea.hbm %s3, %s449
          %s468 = scalar_lea.vmem [#allocation3], %s451
          %s469 = sadd.s32 %s444, 2
          %s470 = scalar_lea.sflag [#allocation4], %s469
          // Predicated region
          $region101: #{tpu_custom_call.1} parent=95 // pred_check
            _
          $region102: #{tpu_custom_call.1} parent=95 // pred_check_branch
            %472 = sbr.rel target = $region104
          $region103: #{tpu_custom_call.1} parent=95 // pred_region
            %473 = sst [smem:[#allocation17]] [#allocation52]
            %474 = sst [smem:[#allocation18]] [#allocation51]
          $region104: #{tpu_custom_call.1} parent=95 // pred_fallthru
            _
          %476 = shalt.err (0)
          %s478 = sshll.u32 %s467, 4
          %s479 = int_to_ptr.hbm [resolvable:$true] %s478
          %s480 = sshll.u32 %s468, 4
          %s481 = int_to_ptr.vmem [resolvable:$true] %s480
          %483 = dma.hbm_to_vmem [thread:$0]  %s479, 16, %s481, %s470
          %s484 = sadd.s32 %s447, 1
          %s485 = sld [smem:[#allocation11 + %s484]]
          %s486 = sld [smem:[#allocation12 + %s484]]
          %s487 = scalar_lea.hbm %s2, %s485
          %s488 = sadd.s32 1, %s451
          %s489 = scalar_lea.vmem [#allocation2], %s488
          // Predicated region
          $region105: #{tpu_custom_call.1} parent=95 // pred_check
            _
          $region106: #{tpu_custom_call.1} parent=95 // pred_check_branch
            %491 = sbr.rel target = $region108
          $region107: #{tpu_custom_call.1} parent=95 // pred_region
            %492 = sst [smem:[#allocation17]] [#allocation54]
            %493 = sst [smem:[#allocation18]] [#allocation53]
          $region108: #{tpu_custom_call.1} parent=95 // pred_fallthru
            _
          %495 = shalt.err (0)
          %s497 = sshll.u32 %s487, 4
          %s498 = int_to_ptr.hbm [resolvable:$true] %s497
          %s499 = sshll.u32 %s489, 4
          %s500 = int_to_ptr.vmem [resolvable:$true] %s499
          %502 = dma.hbm_to_vmem [thread:$0]  %s498, 16, %s500, %s453
          %s503 = scalar_lea.hbm %s3, %s486
          %s504 = scalar_lea.vmem [#allocation3], %s488
          // Predicated region
          $region109: #{tpu_custom_call.1} parent=95 // pred_check
            _
          $region110: #{tpu_custom_call.1} parent=95 // pred_check_branch
            %506 = sbr.rel target = $region112
          $region111: #{tpu_custom_call.1} parent=95 // pred_region
            %507 = sst [smem:[#allocation17]] [#allocation56]
            %508 = sst [smem:[#allocation18]] [#allocation55]
          $region112: #{tpu_custom_call.1} parent=95 // pred_fallthru
            _
          %510 = shalt.err (0)
          %s512 = sshll.u32 %s503, 4
          %s513 = int_to_ptr.hbm [resolvable:$true] %s512
          %s514 = sshll.u32 %s504, 4
          %s515 = int_to_ptr.vmem [resolvable:$true] %s514
          %517 = dma.hbm_to_vmem [thread:$0]  %s513, 16, %s515, %s470
          %s518 = sadd.s32 %s447, 2
          %s519 = sld [smem:[#allocation11 + %s518]]
          %s520 = sld [smem:[#allocation12 + %s518]]
          %s521 = scalar_lea.hbm %s2, %s519
          %s522 = sadd.s32 2, %s451
          %s523 = scalar_lea.vmem [#allocation2], %s522
          // Predicated region
          $region113: #{tpu_custom_call.1} parent=95 // pred_check
            _
          $region114: #{tpu_custom_call.1} parent=95 // pred_check_branch
            %525 = sbr.rel target = $region116
          $region115: #{tpu_custom_call.1} parent=95 // pred_region
            %526 = sst [smem:[#allocation17]] [#allocation58]
            %527 = sst [smem:[#allocation18]] [#allocation57]
          $region116: #{tpu_custom_call.1} parent=95 // pred_fallthru
            _
          %529 = shalt.err (0)
          %s531 = sshll.u32 %s521, 4
          %s532 = int_to_ptr.hbm [resolvable:$true] %s531
          %s533 = sshll.u32 %s523, 4
          %s534 = int_to_ptr.vmem [resolvable:$true] %s533
          %536 = dma.hbm_to_vmem [thread:$0]  %s532, 16, %s534, %s453
          %s537 = scalar_lea.hbm %s3, %s520
          %s538 = scalar_lea.vmem [#allocation3], %s522
          // Predicated region
          $region117: #{tpu_custom_call.1} parent=95 // pred_check
            _
          $region118: #{tpu_custom_call.1} parent=95 // pred_check_branch
            %540 = sbr.rel target = $region120
          $region119: #{tpu_custom_call.1} parent=95 // pred_region
            %541 = sst [smem:[#allocation17]] [#allocation60]
            %542 = sst [smem:[#allocation18]] [#allocation59]
          $region120: #{tpu_custom_call.1} parent=95 // pred_fallthru
            _
          %544 = shalt.err (0)
          %s546 = sshll.u32 %s537, 4
          %s547 = int_to_ptr.hbm [resolvable:$true] %s546
          %s548 = sshll.u32 %s538, 4
          %s549 = int_to_ptr.vmem [resolvable:$true] %s548
          %551 = dma.hbm_to_vmem [thread:$0]  %s547, 16, %s549, %s470
          %s552 = sadd.s32 %s447, 3
          %s553 = sld [smem:[#allocation11 + %s552]]
          %s554 = sld [smem:[#allocation12 + %s552]]
          %s555 = scalar_lea.hbm %s2, %s553
          %s556 = sadd.s32 3, %s451
          %s557 = scalar_lea.vmem [#allocation2], %s556
          // Predicated region
          $region121: #{tpu_custom_call.1} parent=95 // pred_check
            _
          $region122: #{tpu_custom_call.1} parent=95 // pred_check_branch
            %559 = sbr.rel target = $region124
          $region123: #{tpu_custom_call.1} parent=95 // pred_region
            %560 = sst [smem:[#allocation17]] [#allocation62]
            %561 = sst [smem:[#allocation18]] [#allocation61]
          $region124: #{tpu_custom_call.1} parent=95 // pred_fallthru
            _
          %563 = shalt.err (0)
          %s565 = sshll.u32 %s555, 4
          %s566 = int_to_ptr.hbm [resolvable:$true] %s565
          %s567 = sshll.u32 %s557, 4
          %s568 = int_to_ptr.vmem [resolvable:$true] %s567
          %570 = dma.hbm_to_vmem [thread:$0]  %s566, 16, %s568, %s453
          %s571 = scalar_lea.hbm %s3, %s554
          %s572 = scalar_lea.vmem [#allocation3], %s556
          // Predicated region
          $region125: #{tpu_custom_call.1} parent=95 // pred_check
            _
          $region126: #{tpu_custom_call.1} parent=95 // pred_check_branch
            %574 = sbr.rel target = $region128
          $region127: #{tpu_custom_call.1} parent=95 // pred_region
            %575 = sst [smem:[#allocation17]] [#allocation64]
            %576 = sst [smem:[#allocation18]] [#allocation63]
          $region128: #{tpu_custom_call.1} parent=95 // pred_fallthru
            _
          %578 = shalt.err (0)
          %s580 = sshll.u32 %s571, 4
          %s581 = int_to_ptr.hbm [resolvable:$true] %s580
          %s582 = sshll.u32 %s572, 4
          %s583 = int_to_ptr.vmem [resolvable:$true] %s582
          %585 = dma.hbm_to_vmem [thread:$0]  %s581, 16, %s583, %s470
          %s586 = sadd.s32 %s447, 4
          %s587 = sld [smem:[#allocation11 + %s586]]
          %s588 = sld [smem:[#allocation12 + %s586]]
          %s589 = scalar_lea.hbm %s2, %s587
          %s590 = sadd.s32 4, %s451
          %s591 = scalar_lea.vmem [#allocation2], %s590
          // Predicated region
          $region129: #{tpu_custom_call.1} parent=95 // pred_check
            _
          $region130: #{tpu_custom_call.1} parent=95 // pred_check_branch
            %593 = sbr.rel target = $region132
          $region131: #{tpu_custom_call.1} parent=95 // pred_region
            %594 = sst [smem:[#allocation17]] [#allocation66]
            %595 = sst [smem:[#allocation18]] [#allocation65]
          $region132: #{tpu_custom_call.1} parent=95 // pred_fallthru
            _
          %597 = shalt.err (0)
          %s599 = sshll.u32 %s589, 4
          %s600 = int_to_ptr.hbm [resolvable:$true] %s599
          %s601 = sshll.u32 %s591, 4
          %s602 = int_to_ptr.vmem [resolvable:$true] %s601
          %604 = dma.hbm_to_vmem [thread:$0]  %s600, 16, %s602, %s453
          %s605 = scalar_lea.hbm %s3, %s588
          %s606 = scalar_lea.vmem [#allocation3], %s590
          // Predicated region
          $region133: #{tpu_custom_call.1} parent=95 // pred_check
            _
          $region134: #{tpu_custom_call.1} parent=95 // pred_check_branch
            %608 = sbr.rel target = $region136
          $region135: #{tpu_custom_call.1} parent=95 // pred_region
            %609 = sst [smem:[#allocation17]] [#allocation68]
            %610 = sst [smem:[#allocation18]] [#allocation67]
          $region136: #{tpu_custom_call.1} parent=95 // pred_fallthru
            _
          %612 = shalt.err (0)
          %s614 = sshll.u32 %s605, 4
          %s615 = int_to_ptr.hbm [resolvable:$true] %s614
          %s616 = sshll.u32 %s606, 4
          %s617 = int_to_ptr.vmem [resolvable:$true] %s616
          %619 = dma.hbm_to_vmem [thread:$0]  %s615, 16, %s617, %s470
          %s620 = sadd.s32 %s447, 5
          %s621 = sld [smem:[#allocation11 + %s620]]
          %s622 = sld [smem:[#allocation12 + %s620]]
          %s623 = scalar_lea.hbm %s2, %s621
          %s624 = sadd.s32 5, %s451
          %s625 = scalar_lea.vmem [#allocation2], %s624
          // Predicated region
          $region137: #{tpu_custom_call.1} parent=95 // pred_check
            _
          $region138: #{tpu_custom_call.1} parent=95 // pred_check_branch
            %627 = sbr.rel target = $region140
          $region139: #{tpu_custom_call.1} parent=95 // pred_region
            %628 = sst [smem:[#allocation17]] [#allocation70]
            %629 = sst [smem:[#allocation18]] [#allocation69]
          $region140: #{tpu_custom_call.1} parent=95 // pred_fallthru
            _
          %631 = shalt.err (0)
          %s633 = sshll.u32 %s623, 4
          %s634 = int_to_ptr.hbm [resolvable:$true] %s633
          %s635 = sshll.u32 %s625, 4
          %s636 = int_to_ptr.vmem [resolvable:$true] %s635
          %638 = dma.hbm_to_vmem [thread:$0]  %s634, 16, %s636, %s453
          %s639 = scalar_lea.hbm %s3, %s622
          %s640 = scalar_lea.vmem [#allocation3], %s624
          // Predicated region
          $region141: #{tpu_custom_call.1} parent=95 // pred_check
            _
          $region142: #{tpu_custom_call.1} parent=95 // pred_check_branch
            %642 = sbr.rel target = $region144
          $region143: #{tpu_custom_call.1} parent=95 // pred_region
            %643 = sst [smem:[#allocation17]] [#allocation72]
            %644 = sst [smem:[#allocation18]] [#allocation71]
          $region144: #{tpu_custom_call.1} parent=95 // pred_fallthru
            _
          %646 = shalt.err (0)
          %s648 = sshll.u32 %s639, 4
          %s649 = int_to_ptr.hbm [resolvable:$true] %s648
          %s650 = sshll.u32 %s640, 4
          %s651 = int_to_ptr.vmem [resolvable:$true] %s650
          %653 = dma.hbm_to_vmem [thread:$0]  %s649, 16, %s651, %s470
          %s654 = sadd.s32 %s447, 6
          %s655 = sld [smem:[#allocation11 + %s654]]
          %s656 = sld [smem:[#allocation12 + %s654]]
          %s657 = scalar_lea.hbm %s2, %s655
          %s658 = sadd.s32 6, %s451
          %s659 = scalar_lea.vmem [#allocation2], %s658
          // Predicated region
          $region145: #{tpu_custom_call.1} parent=95 // pred_check
            _
          $region146: #{tpu_custom_call.1} parent=95 // pred_check_branch
            %661 = sbr.rel target = $region148
          $region147: #{tpu_custom_call.1} parent=95 // pred_region
            %662 = sst [smem:[#allocation17]] [#allocation74]
            %663 = sst [smem:[#allocation18]] [#allocation73]
          $region148: #{tpu_custom_call.1} parent=95 // pred_fallthru
            _
          %665 = shalt.err (0)
          %s667 = sshll.u32 %s657, 4
          %s668 = int_to_ptr.hbm [resolvable:$true] %s667
          %s669 = sshll.u32 %s659, 4
          %s670 = int_to_ptr.vmem [resolvable:$true] %s669
          %672 = dma.hbm_to_vmem [thread:$0]  %s668, 16, %s670, %s453
          %s673 = scalar_lea.hbm %s3, %s656
          %s674 = scalar_lea.vmem [#allocation3], %s658
          // Predicated region
          $region149: #{tpu_custom_call.1} parent=95 // pred_check
            _
          $region150: #{tpu_custom_call.1} parent=95 // pred_check_branch
            %676 = sbr.rel target = $region152
          $region151: #{tpu_custom_call.1} parent=95 // pred_region
            %677 = sst [smem:[#allocation17]] [#allocation76]
            %678 = sst [smem:[#allocation18]] [#allocation75]
          $region152: #{tpu_custom_call.1} parent=95 // pred_fallthru
            _
          %680 = shalt.err (0)
          %s682 = sshll.u32 %s673, 4
          %s683 = int_to_ptr.hbm [resolvable:$true] %s682
          %s684 = sshll.u32 %s674, 4
          %s685 = int_to_ptr.vmem [resolvable:$true] %s684
          %687 = dma.hbm_to_vmem [thread:$0]  %s683, 16, %s685, %s470
          %s688 = sadd.s32 %s447, 7
          %s689 = sld [smem:[#allocation11 + %s688]]
          %s690 = sld [smem:[#allocation12 + %s688]]
          %s691 = scalar_lea.hbm %s2, %s689
          %s692 = sadd.s32 7, %s451
          %s693 = scalar_lea.vmem [#allocation2], %s692
          // Predicated region
          $region153: #{tpu_custom_call.1} parent=95 // pred_check
            _
          $region154: #{tpu_custom_call.1} parent=95 // pred_check_branch
            %695 = sbr.rel target = $region156
          $region155: #{tpu_custom_call.1} parent=95 // pred_region
            %696 = sst [smem:[#allocation17]] [#allocation78]
            %697 = sst [smem:[#allocation18]] [#allocation77]
          $region156: #{tpu_custom_call.1} parent=95 // pred_fallthru
            _
          %699 = shalt.err (0)
          %s701 = sshll.u32 %s691, 4
          %s702 = int_to_ptr.hbm [resolvable:$true] %s701
          %s703 = sshll.u32 %s693, 4
          %s704 = int_to_ptr.vmem [resolvable:$true] %s703
          %706 = dma.hbm_to_vmem [thread:$0]  %s702, 16, %s704, %s453
          %s707 = scalar_lea.hbm %s3, %s690
          %s708 = scalar_lea.vmem [#allocation3], %s692
          // Predicated region
          $region157: #{tpu_custom_call.1} parent=95 // pred_check
            _
          $region158: #{tpu_custom_call.1} parent=95 // pred_check_branch
            %710 = sbr.rel target = $region160
          $region159: #{tpu_custom_call.1} parent=95 // pred_region
            %711 = sst [smem:[#allocation17]] [#allocation80]
            %712 = sst [smem:[#allocation18]] [#allocation79]
          $region160: #{tpu_custom_call.1} parent=95 // pred_fallthru
            _
          %714 = shalt.err (0)
          %s716 = sshll.u32 %s707, 4
          %s717 = int_to_ptr.hbm [resolvable:$true] %s716
          %s718 = sshll.u32 %s708, 4
          %s719 = int_to_ptr.vmem [resolvable:$true] %s718
          %721 = dma.hbm_to_vmem [thread:$0]  %s717, 16, %s719, %s470
        $region96: #{tpu_custom_call.1} parent=23 // pred_fallthru
          _
        %s722 = smul.u32 %s438, 8
        %s723 = scalar_lea.vmem [#allocation2], %s722
        %s724 = scalar_lea.sflag [#allocation4], %s438
        %s725 = smul.u32 8, 1
        %s726 = sshll.u32 %s725, 4
        %727 = dma.done %s724, %s726
        %s728 = scalar_lea.vmem [#allocation3], %s722
        %s729 = sadd.s32 %s438, 2
        %s730 = scalar_lea.sflag [#allocation4], %s729
        %s731 = sshll.u32 %s725, 4
        %732 = dma.done %s730, %s731
        %v733 = vld [vmem:[%s723] sm:$0xff]
        %v734 = vld [vmem:[%s728] sm:$0xff]
        %v735 = vmul.f32 %v733, %v734
        %736 = vadd.xlane.f32.xlu0 %v735
        %v737 = vpop.xlane.xlu0 %736
        %v738 = vld [vmem:[%s151] sm:$0xff]
        %740 = vrot.lane.b32.xlu0 %v738, 127
        %v741 = vpop.permute.xlu0 %740
        %v743 = vadd.f32 %v738, %v741
        %v744 = vlog2.pop %v738
        %v745 = vmul.f32 %v744, 0.6931472
        %v746 = vsub.f32 %v737, %v745
        %v747 = vld [vmem:[#allocation5] sm:$0xff]
        %v748 = vadd.f32 %v747, %v743
        %vm749 = vcmask 7168
        %750 = vst.msk [vmem:[#allocation5] sm:$0xff] %vm749, %v748
        %v751 = vld [vmem:[#allocation6] sm:$0xff]
        %v752 = vmul.f32 %v743, %v743
        %v753 = vadd.f32 %v751, %v752
        %754 = vst.msk [vmem:[#allocation6] sm:$0xff] %vm749, %v753
        %v755 = vld [vmem:[#allocation7] sm:$0xff]
        %756 = vrot.lane.b32.xlu0 %v738, 125
        %v757 = vpop.permute.xlu0 %756
        %v759 = vadd.f32 %v755, %v757
        %760 = vst.msk [vmem:[#allocation7] sm:$0xff] %vm749, %v759
        %v761 = vld [vmem:[#allocation8] sm:$0xff]
        %763 = vrot.lane.b32.xlu0 %v746, 1
        %v764 = vpop.permute.xlu0 %763
        %v766 = vmul.f32 %v738, %v764
        %768 = vrot.lane.b32.xlu0 %v766, 125
        %v769 = vpop.permute.xlu0 %768
        %v771 = vadd.f32 %v761, %v769
        %772 = vst.msk [vmem:[#allocation8] sm:$0xff] %vm749, %v771
        %v773 = vld [vmem:[#allocation9] sm:$0xff]
        %v774 = vmul.f32 %v766, %v764
        %776 = vrot.lane.b32.xlu0 %v774, 125
        %v777 = vpop.permute.xlu0 %776
        %v779 = vadd.f32 %v773, %v777
        %780 = vst.msk [vmem:[#allocation9] sm:$0xff] %vm749, %v779
        %p781 = scmp.eq.s32.totalorder %s37, 1
        // Predicated region
        $region161: #{tpu_custom_call.1} parent=23 // pred_check
          %p782 = pneg %p781
        $region162: #{tpu_custom_call.1} parent=23 // pred_check_branch
          %784 = sbr.rel (%p782) target = $region164
        $region163: #{tpu_custom_call.1} parent=23 // pred_region
          %v785 = vld [vmem:[#allocation5] sm:$0xff]
          %v786 = vsel %vm749, %v785, 0.0
          %v787 = vrot.slane %v786, 4
          %v788 = vadd.f32 %v786, %v787
          %v789 = vrot.slane %v788, 2
          %v790 = vadd.f32 %v788, %v789
          %v791 = vrot.slane %v790, 1
          %v792 = vadd.f32 %v790, %v791
          %v793 = vld [vmem:[#allocation6] sm:$0xff]
          %v794 = vsel %vm749, %v793, 0.0
          %v795 = vrot.slane %v794, 4
          %v796 = vadd.f32 %v794, %v795
          %v797 = vrot.slane %v796, 2
          %v798 = vadd.f32 %v796, %v797
          %v799 = vrot.slane %v798, 1
          %v800 = vadd.f32 %v798, %v799
          %v801 = vld [vmem:[#allocation7] sm:$0xff]
          %v802 = vsel %vm749, %v801, 0.0
          %v803 = vrot.slane %v802, 4
          %v804 = vadd.f32 %v802, %v803
          %v805 = vrot.slane %v804, 2
          %v806 = vadd.f32 %v804, %v805
          %v807 = vrot.slane %v806, 1
          %v808 = vadd.f32 %v806, %v807
          %v809 = vld [vmem:[#allocation8] sm:$0xff]
          %v810 = vsel %vm749, %v809, 0.0
          %v811 = vrot.slane %v810, 4
          %v812 = vadd.f32 %v810, %v811
          %v813 = vrot.slane %v812, 2
          %v814 = vadd.f32 %v812, %v813
          %v815 = vrot.slane %v814, 1
          %v816 = vadd.f32 %v814, %v815
          %v817 = vld [vmem:[#allocation9] sm:$0xff]
          %v818 = vsel %vm749, %v817, 0.0
          %v819 = vrot.slane %v818, 4
          %v820 = vadd.f32 %v818, %v819
          %v821 = vrot.slane %v820, 2
          %v822 = vadd.f32 %v820, %v821
          %v823 = vrot.slane %v822, 1
          %v824 = vadd.f32 %v822, %v823
          %826 = vrot.lane.b32.xlu0 %v800, 1
          %v827 = vpop.permute.xlu0 %826
          %830 = vrot.lane.b32.xlu0 %v808, 2
          %v831 = vpop.permute.xlu0 %830
          %834 = vrot.lane.b32.xlu0 %v816, 3
          %v835 = vpop.permute.xlu0 %834
          %838 = vrot.lane.b32.xlu0 %v824, 4
          %v839 = vpop.permute.xlu0 %838
          %v841 = vsel %vm749, %v792, %v827
          %vm842 = vcmask 15360
          %v843 = vsel %vm842, %v841, %v831
          %vm844 = vcmask 23552
          %v845 = vsel %vm844, %v843, %v835
          %vm846 = vcmask 31744
          %v847 = vsel %vm846, %v845, %v839
          %vm848 = vcmask 32768
          %849 = vst.msk [vmem:[%s145] sm:$0x1] %vm848, %v847
        $region164: #{tpu_custom_call.1} parent=23 // pred_fallthru
          _
        %s850 = sand.u32 %s82, 1
        %s851 = scalar_lea.sflag [#allocation14], %s850
        %s852 = sand.u32 %s82, 1
        %s853 = scalar_lea.vmem [#allocation13], %s852
        // Predicated region
        $region165: #{tpu_custom_call.1} parent=23 // pred_check
          %p854 = pneg %p92
        $region166: #{tpu_custom_call.1} parent=23 // pred_check_branch
          %856 = sbr.rel (%p854) target = $region168
        $region167: #{tpu_custom_call.1} parent=23 // pred_region
          %858 = vsyncadd %s851, 0
          %s859 = scalar_lea.hbm %s5, %s36
          %s861 = sshll.u32 %s853, 4
          %s862 = int_to_ptr.vmem [resolvable:$true] %s861
          %s863 = sshll.u32 %s859, 4
          %s864 = int_to_ptr.hbm [resolvable:$true] %s863
          %866 = dma.vmem_to_hbm [thread:$0]  %s862, 16, %s864, %s851
        $region168: #{tpu_custom_call.1} parent=23 // pred_fallthru
          _
      $region24: #{tpu_custom_call.1} parent=5 // pred_fallthru
        _
      %p867 = scmp.le.s32.totalorder 2, %s27
      // Predicated region
      $region169: #{tpu_custom_call.1} parent=5 // pred_check
        %p868 = pneg %p867
      $region170: #{tpu_custom_call.1} parent=5 // pred_check_branch
        %870 = sbr.rel (%p868) target = $region172
      $region171: #{tpu_custom_call.1} parent=5 // pred_region
        %s871 = ssub.s32 %s27, 2
        // Predicated region
        $region173: #{tpu_custom_call.1} parent=171 // pred_check
          %p872 = pneg %p98
        $region174: #{tpu_custom_call.1} parent=171 // pred_check_branch
          %874 = sbr.rel (%p872) target = $region176
        $region175: #{tpu_custom_call.1} parent=171 // pred_region
          %s875 = sand.u32 %s83, 1
          %s876 = scalar_lea.sflag [#allocation14], %s875
          %s877 = sand.u32 %s83, 1
          %s878 = scalar_lea.vmem [#allocation13], %s877
          %880 = dma.done %s876, 16
        $region176: #{tpu_custom_call.1} parent=171 // pred_fallthru
          _
      $region172: #{tpu_custom_call.1} parent=5 // pred_fallthru
        _
    $region6: #{tpu_custom_call.1} parent=1 // loop_footer
      %s31 = sadd.s32 1, %s27
    $region7: #{tpu_custom_call.1} parent=1 // loop_footer_branch
      %26 = sbr.rel target = $region3
    $region8: #{tpu_custom_call.1} parent=1 // loop_exit
      _
    %881 = vsyncpa [#allocation14], 1
    %s882 = scalar_lea.sflag [#allocation14], 1
    %883 = vsyncpa %s882, 1
  %884 = vsyncmov [#allocation4]
  %s885 = vpop.sfrf %884
  %p886 = scmp.eq.s32.totalorder %s885, 0
  %p887 = pneg %p886
  %889 = shalt.err (%p887)
  %s890 = scalar_lea.sflag [#allocation4], 1
  %891 = vsyncmov %s890
  %s892 = vpop.sfrf %891
  %p893 = scmp.eq.s32.totalorder %s892, 0
  %p894 = pneg %p893
  %896 = shalt.err (%p894)
  %s897 = scalar_lea.sflag [#allocation4], 2
  %898 = vsyncmov %s897
  %s899 = vpop.sfrf %898
  %p900 = scmp.eq.s32.totalorder %s899, 0
  %p901 = pneg %p900
  %903 = shalt.err (%p901)
  %s904 = scalar_lea.sflag [#allocation4], 3
  %905 = vsyncmov %s904
  %s906 = vpop.sfrf %905
  %p907 = scmp.eq.s32.totalorder %s906, 0
  %p908 = pneg %p907
  %910 = shalt.err (%p908)

</llo_original>
